<compile_context>
chip_gen: v5e
topology: v5e:2x2
jax: 0.10.0
libtpu: 0.0.40
codegen_flags: <defaults>
</compile_context>

<pallas_src>
import jax
import jax.numpy as jnp
from jax import lax
from jax.experimental import pallas as pl
from jax.experimental.pallas import tpu as pltpu

EPS = 1e-5


def _bn_relu(h, gamma, beta):
    # BatchNorm1d in train mode (biased batch statistics), one reduce pass, then ReLU.
    mean = jnp.mean(h, axis=0, keepdims=True)
    mean_sq = jnp.mean(h * h, axis=0, keepdims=True)
    var = jnp.maximum(mean_sq - mean * mean, 0.0)
    h = (h - mean) * lax.rsqrt(var + EPS) * gamma + beta
    return jnp.maximum(h, 0.0)


def _generator_kernel(noise_ref, labels_ref, emb_ref,
                      w1n_ref, w1e_ref, b1_ref, g1_ref, beta1_ref,
                      w2_ref, b2_ref, g2_ref, beta2_ref,
                      w3_ref, b3_ref, out_ref):
    noise = noise_ref[0]            # (B, input_dim) f32
    lab = labels_ref[0]             # (B, 1) int32
    B = noise.shape[0]
    C = emb_ref.shape[0]

    # In-kernel one-hot: onehot[b, c] = (c == labels[b]); embedding lookup as MXU matmul.
    col = lax.broadcasted_iota(jnp.int32, (B, C), 1)
    onehot = (col == lab).astype(jnp.float32)
    emb = jnp.dot(onehot, emb_ref[...], preferred_element_type=jnp.float32)

    # Linear 1 on concatenated [noise, emb] via split matmul (concat-free, exact).
    h = (jnp.dot(noise, w1n_ref[...], preferred_element_type=jnp.float32)
         + jnp.dot(emb, w1e_ref[...], preferred_element_type=jnp.float32)
         + b1_ref[...])
    h = _bn_relu(h, g1_ref[...], beta1_ref[...])

    # Linear 2 + BN + ReLU.
    h = jnp.dot(h, w2_ref[...], preferred_element_type=jnp.float32) + b2_ref[...]
    h = _bn_relu(h, g2_ref[...], beta2_ref[...])

    # Linear 3 + Softmax(dim=1).
    logits = jnp.dot(h, w3_ref[...], preferred_element_type=jnp.float32) + b3_ref[...]
    m = jnp.max(logits, axis=1, keepdims=True)
    e = jnp.exp(logits - m)
    denom = jnp.sum(e, axis=1, keepdims=True)
    out_ref[0] = (e * pl.reciprocal(denom, approx=False)).astype(out_ref.dtype)


def _operands(noise_g, labels_g, params):
    return (noise_g, labels_g, params["emb"],
            params["w1n"], params["w1e"], params["b1"], params["g1"], params["beta1"],
            params["w2"], params["b2"], params["g2"], params["beta2"],
            params["w3"], params["b3"])


def generator_forward_grouped(noise, labels, params):
    """Fused path: noise (G, B, input_dim) f32, labels (G, B) int -> (G, B, num_classes) f32.

    Each group g is one independent Generator.forward call (BN stats per group).
    Weights stay VMEM-resident across the G grid steps (constant block index).
    """
    G, B, _ = noise.shape
    C = params["emb"].shape[0]
    labels3 = labels.astype(jnp.int32).reshape(G, B, 1)
    operands = _operands(noise, labels3, params)

    def per_group(shape):                 # new block each grid step (3D arrays)
        return pl.BlockSpec((1,) + tuple(shape[1:]), lambda g: (g, 0, 0))

    def resident(shape):                  # constant block index -> kept resident in VMEM
        return pl.BlockSpec(tuple(shape), lambda g, _n=len(shape): (0,) * _n)

    in_specs = [per_group(noise.shape), per_group(labels3.shape)]
    in_specs += [resident(op.shape) for op in operands[2:]]

    return pl.pallas_call(
        _generator_kernel,
        out_shape=jax.ShapeDtypeStruct((G, B, C), jnp.float32),
        grid=(G,),
        in_specs=in_specs,
        out_specs=per_group((G, B, C)),
        compiler_params=pltpu.CompilerParams(
            dimension_semantics=("parallel",)),   # both TensorCores on v7x
    )(*operands)


def generator_forward(noise, labels, params):
    """Single batch (module call signature): noise (B, input_dim), labels (B,) -> (B, num_classes).

    Grid-less pallas_call: full arrays resident in VMEM, no pipeline machinery.
    """
    B, _ = noise.shape
    C = params["emb"].shape[0]
    operands = _operands(noise[None], labels.astype(jnp.int32).reshape(1, B, 1), params)

    vmem = pl.BlockSpec(memory_space=pltpu.MemorySpace.VMEM)
    out = pl.pallas_call(
        _generator_kernel,
        out_shape=jax.ShapeDtypeStruct((1, B, C), jnp.float32),
        in_specs=[vmem] * len(operands),
        out_specs=vmem,
    )(*operands)
    return out[0]


def init_params(key, input_dim, num_classes, embed_dim=50, hidden=512):
    ks = jax.random.split(key, 8)

    def lin(k, fan_in, fan_out):
        # deterministic small-scale init (synthetic weights, not a checkpoint)
        bound = 1.0 / jnp.sqrt(fan_in)
        kw, kb = jax.random.split(k)
        w = jax.random.uniform(kw, (fan_in, fan_out), jnp.float32, -bound, bound)
        b = jax.random.uniform(kb, (1, fan_out), jnp.float32, -bound, bound)
        return w, b

    emb = jax.random.normal(ks[0], (num_classes, embed_dim), jnp.float32)
    w1, b1 = lin(ks[1], input_dim + embed_dim, hidden)
    w2, b2 = lin(ks[2], hidden, hidden)
    w3, b3 = lin(ks[3], hidden, num_classes)

    return {
        "emb": emb,
        "w1n": w1[:input_dim],          # split of W1 for the concat-free formulation
        "w1e": w1[input_dim:],
        "b1": b1,
        "g1": jnp.ones((1, hidden), jnp.float32),      # BN weight init = 1
        "beta1": jnp.zeros((1, hidden), jnp.float32),  # BN bias init = 0
        "w2": w2, "b2": b2,
        "g2": jnp.ones((1, hidden), jnp.float32),
        "beta2": jnp.zeros((1, hidden), jnp.float32),
        "w3": w3, "b3": b3,
    }


def _reference_forward(noise, labels, params):
    # Pure-JAX reference of the exact same math (PyTorch module semantics).
    emb = params["emb"][labels]
    x = jnp.concatenate([noise, emb], axis=1)
    w1 = jnp.concatenate([params["w1n"], params["w1e"]], axis=0)
    h = x @ w1 + params["b1"]
    mean = h.mean(0, keepdims=True); var = ((h - mean) ** 2).mean(0, keepdims=True)
    h = (h - mean) / jnp.sqrt(var + EPS) * params["g1"] + params["beta1"]
    h = jnp.maximum(h, 0.0)
    h = h @ params["w2"] + params["b2"]
    mean = h.mean(0, keepdims=True); var = ((h - mean) ** 2).mean(0, keepdims=True)
    h = (h - mean) / jnp.sqrt(var + EPS) * params["g2"] + params["beta2"]
    h = jnp.maximum(h, 0.0)
    logits = h @ params["w3"] + params["b3"]
    return jax.nn.softmax(logits, axis=1)


if __name__ == "__main__":
    B, INPUT_DIM, NUM_CLASSES, EMBED_DIM = 8, 32, 10, 50
    G = 4   # four independent B=8 batches fused into one pallas_call

    key = jax.random.PRNGKey(0)
    k_noise, k_labels, k_params = jax.random.split(key, 3)

    noise = jax.random.normal(k_noise, (G, B, INPUT_DIM), jnp.float32)
    labels = jax.random.randint(k_labels, (G, B), 0, NUM_CLASSES, jnp.int32)
    params = init_params(k_params, INPUT_DIM, NUM_CLASSES, EMBED_DIM)

    # Fused grouped path: weights stay VMEM-resident across the G grid steps.
    out_grouped = jax.block_until_ready(generator_forward_grouped(noise, labels, params))

    # Single-batch grid-less path (module call signature).
    out_single = jax.block_until_ready(generator_forward(noise[0], labels[0], params))

    assert out_grouped.shape == (G, B, NUM_CLASSES)
    assert out_single.shape == (B, NUM_CLASSES)
    assert jnp.allclose(out_grouped.sum(axis=-1), 1.0, atol=1e-5)
    assert jnp.allclose(out_single.sum(axis=-1), 1.0, atol=1e-5)

    for g in range(G):
        ref_g = _reference_forward(noise[g], labels[g], params)
        assert jnp.allclose(out_grouped[g], ref_g, atol=1e-5, rtol=1e-5)
    assert jnp.allclose(out_single, _reference_forward(noise[0], labels[0], params),
                        atol=1e-5, rtol=1e-5)

    print("KERNEL_OK")
</pallas_src>

<mosaic_0001>
module attributes {stable_mosaic.version = 11 : i64} {
  func.func @_generator_kernel(%arg0: i32, %arg1: memref<1x8x32xf32, #tpu.memory_space<vmem>>, %arg2: memref<1x8x1xi32, #tpu.memory_space<vmem>>, %arg3: memref<10x50xf32, #tpu.memory_space<vmem>>, %arg4: memref<32x512xf32, #tpu.memory_space<vmem>>, %arg5: memref<50x512xf32, #tpu.memory_space<vmem>>, %arg6: memref<1x512xf32, #tpu.memory_space<vmem>>, %arg7: memref<1x512xf32, #tpu.memory_space<vmem>>, %arg8: memref<1x512xf32, #tpu.memory_space<vmem>>, %arg9: memref<512x512xf32, #tpu.memory_space<vmem>>, %arg10: memref<1x512xf32, #tpu.memory_space<vmem>>, %arg11: memref<1x512xf32, #tpu.memory_space<vmem>>, %arg12: memref<1x512xf32, #tpu.memory_space<vmem>>, %arg13: memref<512x10xf32, #tpu.memory_space<vmem>>, %arg14: memref<1x10xf32, #tpu.memory_space<vmem>>, %arg15: memref<1x8x10xf32, #tpu.memory_space<vmem>>) attributes {dimension_semantics = [#tpu.dimension_semantics<parallel>], iteration_bounds = array<i64: 4>, scalar_prefetch = 0 : i64, scratch_operands = 0 : i64, tpu.core_type = #tpu.core_type<tc>, window_params = [{transform_indices = @transform_0, window_bounds = array<i64: 1, 8, 32>}, {transform_indices = @transform_1, window_bounds = array<i64: 1, 8, 1>}, {pipeline_mode = #tpu.pipeline_mode<synchronous>, transform_indices = @transform_2, window_bounds = array<i64: 10, 50>}, {pipeline_mode = #tpu.pipeline_mode<synchronous>, transform_indices = @transform_3, window_bounds = array<i64: 32, 512>}, {pipeline_mode = #tpu.pipeline_mode<synchronous>, transform_indices = @transform_4, window_bounds = array<i64: 50, 512>}, {pipeline_mode = #tpu.pipeline_mode<synchronous>, transform_indices = @transform_5, window_bounds = array<i64: 1, 512>}, {pipeline_mode = #tpu.pipeline_mode<synchronous>, transform_indices = @transform_6, window_bounds = array<i64: 1, 512>}, {pipeline_mode = #tpu.pipeline_mode<synchronous>, transform_indices = @transform_7, window_bounds = array<i64: 1, 512>}, {pipeline_mode = #tpu.pipeline_mode<synchronous>, transform_indices = @transform_8, window_bounds = array<i64: 512, 512>}, {pipeline_mode = #tpu.pipeline_mode<synchronous>, transform_indices = @transform_9, window_bounds = array<i64: 1, 512>}, {pipeline_mode = #tpu.pipeline_mode<synchronous>, transform_indices = @transform_10, window_bounds = array<i64: 1, 512>}, {pipeline_mode = #tpu.pipeline_mode<synchronous>, transform_indices = @transform_11, window_bounds = array<i64: 1, 512>}, {pipeline_mode = #tpu.pipeline_mode<synchronous>, transform_indices = @transform_12, window_bounds = array<i64: 512, 10>}, {pipeline_mode = #tpu.pipeline_mode<synchronous>, transform_indices = @transform_13, window_bounds = array<i64: 1, 10>}, {transform_indices = @transform_14, window_bounds = array<i64: 1, 8, 10>}]} {
    %c0 = arith.constant 0 : index
    %c0_0 = arith.constant 0 : index
    %c0_1 = arith.constant 0 : index
    %0 = vector.load %arg1[%c0, %c0_0, %c0_1] : memref<1x8x32xf32, #tpu.memory_space<vmem>>, vector<1x8x32xf32>
    %1 = vector.shape_cast %0 : vector<1x8x32xf32> to vector<8x32xf32>
    %c0_2 = arith.constant 0 : index
    %c0_3 = arith.constant 0 : index
    %c0_4 = arith.constant 0 : index
    %2 = vector.load %arg2[%c0_2, %c0_3, %c0_4] : memref<1x8x1xi32, #tpu.memory_space<vmem>>, vector<1x8x1xi32>
    %3 = vector.shape_cast %2 : vector<1x8x1xi32> to vector<8x1xi32>
    %4 = tpu.iota {dimensions = array<i32: 1>} : vector<8x10xi32>
    %5 = vector.broadcast %3 : vector<8x1xi32> to vector<8x10xi32>
    %6 = arith.cmpi eq, %4, %5 : vector<8x10xi32>
    %7 = arith.extui %6 : vector<8x10xi1> to vector<8x10xi32>
    %8 = arith.sitofp %7 : vector<8x10xi32> to vector<8x10xf32>
    %c0_5 = arith.constant 0 : index
    %c0_6 = arith.constant 0 : index
    %9 = vector.load %arg3[%c0_5, %c0_6] : memref<10x50xf32, #tpu.memory_space<vmem>>, vector<10x50xf32>
    %cst = arith.constant dense<0.000000e+00> : vector<8x50xf32>
    %10 = tpu.matmul %8, %9, %cst {dimension_numbers = #tpu.dot_dimension_numbers<[1], [0], [0], [1], [0, 0, 1, 1], [], []>} : vector<8x10xf32>, vector<10x50xf32>, vector<8x50xf32> -> vector<8x50xf32>
    %c0_7 = arith.constant 0 : index
    %c0_8 = arith.constant 0 : index
    %11 = vector.load %arg4[%c0_7, %c0_8] : memref<32x512xf32, #tpu.memory_space<vmem>>, vector<32x512xf32>
    %cst_9 = arith.constant dense<0.000000e+00> : vector<8x512xf32>
    %12 = tpu.matmul %1, %11, %cst_9 {dimension_numbers = #tpu.dot_dimension_numbers<[1], [0], [0], [1], [0, 0, 1, 1], [], []>} : vector<8x32xf32>, vector<32x512xf32>, vector<8x512xf32> -> vector<8x512xf32>
    %c0_10 = arith.constant 0 : index
    %c0_11 = arith.constant 0 : index
    %13 = vector.load %arg5[%c0_10, %c0_11] : memref<50x512xf32, #tpu.memory_space<vmem>>, vector<50x512xf32>
    %cst_12 = arith.constant dense<0.000000e+00> : vector<8x512xf32>
    %14 = tpu.matmul %10, %13, %cst_12 {dimension_numbers = #tpu.dot_dimension_numbers<[1], [0], [0], [1], [0, 0, 1, 1], [], []>} : vector<8x50xf32>, vector<50x512xf32>, vector<8x512xf32> -> vector<8x512xf32>
    %15 = arith.addf %12, %14 : vector<8x512xf32>
    %c0_13 = arith.constant 0 : index
    %c0_14 = arith.constant 0 : index
    %16 = vector.load %arg6[%c0_13, %c0_14] : memref<1x512xf32, #tpu.memory_space<vmem>>, vector<1x512xf32>
    %17 = vector.broadcast %16 : vector<1x512xf32> to vector<8x512xf32>
    %18 = arith.addf %15, %17 : vector<8x512xf32>
    %c0_15 = arith.constant 0 : index
    %c0_16 = arith.constant 0 : index
    %19 = vector.load %arg7[%c0_15, %c0_16] : memref<1x512xf32, #tpu.memory_space<vmem>>, vector<1x512xf32>
    %c0_17 = arith.constant 0 : index
    %c0_18 = arith.constant 0 : index
    %20 = vector.load %arg8[%c0_17, %c0_18] : memref<1x512xf32, #tpu.memory_space<vmem>>, vector<1x512xf32>
    %cst_19 = arith.constant dense<0.000000e+00> : vector<512xf32>
    %21 = vector.multi_reduction <add>, %18, %cst_19 [0] : vector<8x512xf32> to vector<512xf32>
    %22 = vector.shape_cast %21 : vector<512xf32> to vector<1x512xf32>
    %cst_20 = arith.constant 8.000000e+00 : f32
    %23 = vector.broadcast %cst_20 : f32 to vector<1x512xf32>
    %24 = arith.divf %22, %23 : vector<1x512xf32>
    %25 = arith.mulf %18, %18 : vector<8x512xf32>
    %cst_21 = arith.constant dense<0.000000e+00> : vector<512xf32>
    %26 = vector.multi_reduction <add>, %25, %cst_21 [0] : vector<8x512xf32> to vector<512xf32>
    %27 = vector.shape_cast %26 : vector<512xf32> to vector<1x512xf32>
    %cst_22 = arith.constant 8.000000e+00 : f32
    %28 = vector.broadcast %cst_22 : f32 to vector<1x512xf32>
    %29 = arith.divf %27, %28 : vector<1x512xf32>
    %30 = arith.mulf %24, %24 : vector<1x512xf32>
    %31 = arith.subf %29, %30 : vector<1x512xf32>
    %cst_23 = arith.constant 0.000000e+00 : f32
    %32 = vector.broadcast %cst_23 : f32 to vector<1x512xf32>
    %33 = arith.maximumf %31, %32 : vector<1x512xf32>
    %34 = vector.broadcast %24 : vector<1x512xf32> to vector<8x512xf32>
    %35 = arith.subf %18, %34 : vector<8x512xf32>
    %cst_24 = arith.constant 9.99999974E-6 : f32
    %36 = vector.broadcast %cst_24 : f32 to vector<1x512xf32>
    %37 = arith.addf %33, %36 : vector<1x512xf32>
    %38 = math.rsqrt %37 : vector<1x512xf32>
    %39 = vector.broadcast %38 : vector<1x512xf32> to vector<8x512xf32>
    %40 = arith.mulf %35, %39 : vector<8x512xf32>
    %41 = vector.broadcast %19 : vector<1x512xf32> to vector<8x512xf32>
    %42 = arith.mulf %40, %41 : vector<8x512xf32>
    %43 = vector.broadcast %20 : vector<1x512xf32> to vector<8x512xf32>
    %44 = arith.addf %42, %43 : vector<8x512xf32>
    %cst_25 = arith.constant 0.000000e+00 : f32
    %45 = vector.broadcast %cst_25 : f32 to vector<8x512xf32>
    %46 = arith.maximumf %44, %45 : vector<8x512xf32>
    %c0_26 = arith.constant 0 : index
    %c0_27 = arith.constant 0 : index
    %47 = vector.load %arg9[%c0_26, %c0_27] : memref<512x512xf32, #tpu.memory_space<vmem>>, vector<512x512xf32>
    %cst_28 = arith.constant dense<0.000000e+00> : vector<8x512xf32>
    %48 = tpu.matmul %46, %47, %cst_28 {dimension_numbers = #tpu.dot_dimension_numbers<[1], [0], [0], [1], [0, 0, 1, 1], [], []>} : vector<8x512xf32>, vector<512x512xf32>, vector<8x512xf32> -> vector<8x512xf32>
    %c0_29 = arith.constant 0 : index
    %c0_30 = arith.constant 0 : index
    %49 = vector.load %arg10[%c0_29, %c0_30] : memref<1x512xf32, #tpu.memory_space<vmem>>, vector<1x512xf32>
    %50 = vector.broadcast %49 : vector<1x512xf32> to vector<8x512xf32>
    %51 = arith.addf %48, %50 : vector<8x512xf32>
    %c0_31 = arith.constant 0 : index
    %c0_32 = arith.constant 0 : index
    %52 = vector.load %arg11[%c0_31, %c0_32] : memref<1x512xf32, #tpu.memory_space<vmem>>, vector<1x512xf32>
    %c0_33 = arith.constant 0 : index
    %c0_34 = arith.constant 0 : index
    %53 = vector.load %arg12[%c0_33, %c0_34] : memref<1x512xf32, #tpu.memory_space<vmem>>, vector<1x512xf32>
    %cst_35 = arith.constant dense<0.000000e+00> : vector<512xf32>
    %54 = vector.multi_reduction <add>, %51, %cst_35 [0] : vector<8x512xf32> to vector<512xf32>
    %55 = vector.shape_cast %54 : vector<512xf32> to vector<1x512xf32>
    %cst_36 = arith.constant 8.000000e+00 : f32
    %56 = vector.broadcast %cst_36 : f32 to vector<1x512xf32>
    %57 = arith.divf %55, %56 : vector<1x512xf32>
    %58 = arith.mulf %51, %51 : vector<8x512xf32>
    %cst_37 = arith.constant dense<0.000000e+00> : vector<512xf32>
    %59 = vector.multi_reduction <add>, %58, %cst_37 [0] : vector<8x512xf32> to vector<512xf32>
    %60 = vector.shape_cast %59 : vector<512xf32> to vector<1x512xf32>
    %cst_38 = arith.constant 8.000000e+00 : f32
    %61 = vector.broadcast %cst_38 : f32 to vector<1x512xf32>
    %62 = arith.divf %60, %61 : vector<1x512xf32>
    %63 = arith.mulf %57, %57 : vector<1x512xf32>
    %64 = arith.subf %62, %63 : vector<1x512xf32>
    %cst_39 = arith.constant 0.000000e+00 : f32
    %65 = vector.broadcast %cst_39 : f32 to vector<1x512xf32>
    %66 = arith.maximumf %64, %65 : vector<1x512xf32>
    %67 = vector.broadcast %57 : vector<1x512xf32> to vector<8x512xf32>
    %68 = arith.subf %51, %67 : vector<8x512xf32>
    %cst_40 = arith.constant 9.99999974E-6 : f32
    %69 = vector.broadcast %cst_40 : f32 to vector<1x512xf32>
    %70 = arith.addf %66, %69 : vector<1x512xf32>
    %71 = math.rsqrt %70 : vector<1x512xf32>
    %72 = vector.broadcast %71 : vector<1x512xf32> to vector<8x512xf32>
    %73 = arith.mulf %68, %72 : vector<8x512xf32>
    %74 = vector.broadcast %52 : vector<1x512xf32> to vector<8x512xf32>
    %75 = arith.mulf %73, %74 : vector<8x512xf32>
    %76 = vector.broadcast %53 : vector<1x512xf32> to vector<8x512xf32>
    %77 = arith.addf %75, %76 : vector<8x512xf32>
    %cst_41 = arith.constant 0.000000e+00 : f32
    %78 = vector.broadcast %cst_41 : f32 to vector<8x512xf32>
    %79 = arith.maximumf %77, %78 : vector<8x512xf32>
    %c0_42 = arith.constant 0 : index
    %c0_43 = arith.constant 0 : index
    %80 = vector.load %arg13[%c0_42, %c0_43] : memref<512x10xf32, #tpu.memory_space<vmem>>, vector<512x10xf32>
    %cst_44 = arith.constant dense<0.000000e+00> : vector<8x10xf32>
    %81 = tpu.matmul %79, %80, %cst_44 {dimension_numbers = #tpu.dot_dimension_numbers<[1], [0], [0], [1], [0, 0, 1, 1], [], []>} : vector<8x512xf32>, vector<512x10xf32>, vector<8x10xf32> -> vector<8x10xf32>
    %c0_45 = arith.constant 0 : index
    %c0_46 = arith.constant 0 : index
    %82 = vector.load %arg14[%c0_45, %c0_46] : memref<1x10xf32, #tpu.memory_space<vmem>>, vector<1x10xf32>
    %83 = vector.broadcast %82 : vector<1x10xf32> to vector<8x10xf32>
    %84 = arith.addf %81, %83 : vector<8x10xf32>
    %cst_47 = arith.constant dense<0xFF800000> : vector<8xf32>
    %85 = vector.multi_reduction <maximumf>, %84, %cst_47 [1] : vector<8x10xf32> to vector<8xf32>
    %86 = vector.shape_cast %85 : vector<8xf32> to vector<8x1xf32>
    %87 = vector.broadcast %86 : vector<8x1xf32> to vector<8x10xf32>
    %88 = arith.subf %84, %87 : vector<8x10xf32>
    %89 = math.exp %88 : vector<8x10xf32>
    %cst_48 = arith.constant dense<0.000000e+00> : vector<8xf32>
    %90 = vector.multi_reduction <add>, %89, %cst_48 [1] : vector<8x10xf32> to vector<8xf32>
    %91 = vector.shape_cast %90 : vector<8xf32> to vector<8x1xf32>
    %92 = tpu.reciprocal %91 : vector<8x1xf32> -> vector<8x1xf32>
    %93 = vector.broadcast %92 : vector<8x1xf32> to vector<8x10xf32>
    %94 = arith.mulf %89, %93 : vector<8x10xf32>
    %c0_49 = arith.constant 0 : index
    %c0_50 = arith.constant 0 : index
    %c0_51 = arith.constant 0 : index
    %95 = vector.load %arg15[%c0_49, %c0_50, %c0_51] : memref<1x8x10xf32, #tpu.memory_space<vmem>>, vector<1x8x10xf32>
    %96 = vector.shape_cast %95 : vector<1x8x10xf32> to vector<8x10xf32>
    %97 = vector.shape_cast %94 : vector<8x10xf32> to vector<1x8x10xf32>
    tpu.vector_store %arg15[%c0_49, %c0_50, %c0_51], %97 {strides = array<i32>} : memref<1x8x10xf32, #tpu.memory_space<vmem>>, vector<1x8x10xf32>,
    return
  }
  func.func @transform_0(%arg0: i32) -> (i32, i32, i32) {
    %c0_i32 = arith.constant 0 : i32
    %c0_i32_0 = arith.constant 0 : i32
    %c0_i32_1 = arith.constant 0 : i32
    return %arg0, %c0_i32, %c0_i32_0 : i32, i32, i32
  }
  func.func @transform_1(%arg0: i32) -> (i32, i32, i32) {
    %c0_i32 = arith.constant 0 : i32
    %c0_i32_0 = arith.constant 0 : i32
    %c0_i32_1 = arith.constant 0 : i32
    return %arg0, %c0_i32, %c0_i32_0 : i32, i32, i32
  }
  func.func @transform_2(%arg0: i32) -> (i32, i32) {
    %c0_i32 = arith.constant 0 : i32
    %c0_i32_0 = arith.constant 0 : i32
    %c0_i32_1 = arith.constant 0 : i32
    return %c0_i32, %c0_i32_0 : i32, i32
  }
  func.func @transform_3(%arg0: i32) -> (i32, i32) {
    %c0_i32 = arith.constant 0 : i32
    %c0_i32_0 = arith.constant 0 : i32
    %c0_i32_1 = arith.constant 0 : i32
    return %c0_i32, %c0_i32_0 : i32, i32
  }
  func.func @transform_4(%arg0: i32) -> (i32, i32) {
    %c0_i32 = arith.constant 0 : i32
    %c0_i32_0 = arith.constant 0 : i32
    %c0_i32_1 = arith.constant 0 : i32
    return %c0_i32, %c0_i32_0 : i32, i32
  }
  func.func @transform_5(%arg0: i32) -> (i32, i32) {
    %c0_i32 = arith.constant 0 : i32
    %c0_i32_0 = arith.constant 0 : i32
    %c0_i32_1 = arith.constant 0 : i32
    return %c0_i32, %c0_i32_0 : i32, i32
  }
  func.func @transform_6(%arg0: i32) -> (i32, i32) {
    %c0_i32 = arith.constant 0 : i32
    %c0_i32_0 = arith.constant 0 : i32
    %c0_i32_1 = arith.constant 0 : i32
    return %c0_i32, %c0_i32_0 : i32, i32
  }
  func.func @transform_7(%arg0: i32) -> (i32, i32) {
    %c0_i32 = arith.constant 0 : i32
    %c0_i32_0 = arith.constant 0 : i32
    %c0_i32_1 = arith.constant 0 : i32
    return %c0_i32, %c0_i32_0 : i32, i32
  }
  func.func @transform_8(%arg0: i32) -> (i32, i32) {
    %c0_i32 = arith.constant 0 : i32
    %c0_i32_0 = arith.constant 0 : i32
    %c0_i32_1 = arith.constant 0 : i32
    return %c0_i32, %c0_i32_0 : i32, i32
  }
  func.func @transform_9(%arg0: i32) -> (i32, i32) {
    %c0_i32 = arith.constant 0 : i32
    %c0_i32_0 = arith.constant 0 : i32
    %c0_i32_1 = arith.constant 0 : i32
    return %c0_i32, %c0_i32_0 : i32, i32
  }
  func.func @transform_10(%arg0: i32) -> (i32, i32) {
    %c0_i32 = arith.constant 0 : i32
    %c0_i32_0 = arith.constant 0 : i32
    %c0_i32_1 = arith.constant 0 : i32
    return %c0_i32, %c0_i32_0 : i32, i32
  }
  func.func @transform_11(%arg0: i32) -> (i32, i32) {
    %c0_i32 = arith.constant 0 : i32
    %c0_i32_0 = arith.constant 0 : i32
    %c0_i32_1 = arith.constant 0 : i32
    return %c0_i32, %c0_i32_0 : i32, i32
  }
  func.func @transform_12(%arg0: i32) -> (i32, i32) {
    %c0_i32 = arith.constant 0 : i32
    %c0_i32_0 = arith.constant 0 : i32
    %c0_i32_1 = arith.constant 0 : i32
    return %c0_i32, %c0_i32_0 : i32, i32
  }
  func.func @transform_13(%arg0: i32) -> (i32, i32) {
    %c0_i32 = arith.constant 0 : i32
    %c0_i32_0 = arith.constant 0 : i32
    %c0_i32_1 = arith.constant 0 : i32
    return %c0_i32, %c0_i32_0 : i32, i32
  }
  func.func @transform_14(%arg0: i32) -> (i32, i32, i32) {
    %c0_i32 = arith.constant 0 : i32
    %c0_i32_0 = arith.constant 0 : i32
    %c0_i32_1 = arith.constant 0 : i32
    return %arg0, %c0_i32, %c0_i32_0 : i32, i32, i32
  }
}

</mosaic_0001>

<llo_original>
// kernel: tpu_custom_call.1
$region0: #{tpu_custom_call.1}
  #allocation0 [shape = 'u32[]', space=smem, size = 0x4, offset = 0x4, fixed_abs, tag = 'smem constant byte address 0x4 - core index']
  #allocation1 [shape = 'u32[72,128]{1,0:T(1,128)}', space=vmem, size = 0x9000, scoped, tag = 'internal scratch']
  %s0 = inlined_call_operand.vmem [shape: f32[4,8,32], index: 0, kind: input, shape index: {}]
  %s1 = inlined_call_operand.vmem [shape: s32[4,8,1], index: 1, kind: input, shape index: {}]
  %s2 = inlined_call_operand.vmem [shape: f32[10,50], index: 2, kind: input, shape index: {}]
  %s3 = inlined_call_operand.vmem [shape: f32[32,512], index: 3, kind: input, shape index: {}]
  %s4 = inlined_call_operand.vmem [shape: f32[50,512], index: 4, kind: input, shape index: {}]
  %s5 = inlined_call_operand.vmem [shape: f32[1,512], index: 5, kind: input, shape index: {}]
  %s6 = inlined_call_operand.vmem [shape: f32[1,512], index: 6, kind: input, shape index: {}]
  %s7 = inlined_call_operand.vmem [shape: f32[1,512], index: 7, kind: input, shape index: {}]
  %s8 = inlined_call_operand.hbm [shape: f32[512,512], index: 8, kind: input, shape index: {}]
  %s9 = inlined_call_operand.vmem [shape: f32[1,512], index: 9, kind: input, shape index: {}]
  %s10 = inlined_call_operand.vmem [shape: f32[1,512], index: 10, kind: input, shape index: {}]
  %s11 = inlined_call_operand.vmem [shape: f32[1,512], index: 11, kind: input, shape index: {}]
  %s12 = inlined_call_operand.vmem [shape: f32[512,10], index: 12, kind: input, shape index: {}]
  %s13 = inlined_call_operand.vmem [shape: f32[1,10], index: 13, kind: input, shape index: {}]
  %s14 = inlined_call_operand.hbm [shape: f32[4,8,10], index: 14, kind: output, shape index: {}]
  %s15 = sld [smem:[#allocation0]]
  $region93: #{tpu_custom_call.1} parent=0
    _
  %s17 = ssub.s32 1, %s15
  %s18 = scalar_select 0, %s17, %s15
  $region1: #{tpu_custom_call.1} parent=0
    #allocation2 [shape = 'u8[1048576]{0}', space=vmem, size = 0x100000, scoped, tag = 'input window, operand 8, single buffered']
    #allocation3 [shape = 's32[2]{0}', space=sflag, size = 0x8, scoped, tag = 'scoped memory for tpu_custom_call.1']
    #allocation4 [shape = 's32[2]{0}', space=sflag, size = 0x8, scoped, tag = 'scoped memory for tpu_custom_call.1']
    #allocation5 [shape = 'u8[8192]{0}', space=vmem, size = 0x2000, scoped, tag = 'output window, operand 0']
    %19 = vsyncpa [#allocation3], 0
    %20 = vsyncpa [#allocation4], 0
    %s21 = scalar_lea.sflag [#allocation4], 1
    %22 = vsyncpa %s21, 0
    loop: start=0, step=1, limit=6
    $region2: #{tpu_custom_call.1} parent=1 // loop_pre_header
      _
    $region3: #{tpu_custom_call.1} parent=1 // loop_header
      %s24 = sphi 0, %s28
      %p25 = scmp.ge.s32.totalorder %s24, 6
      %s34 = sphi 0, %s36
      %s37 = sphi 0, %s34
      %s38 = sphi 0, %s37
      %s54 = sphi 0, %s38
      %s60 = sphi 0, %s62
      %s63 = sphi 0, %s60
      %s64 = sphi 0, %s63
      %s80 = sphi 0, %s64
      %s84 = sphi 0, %s84
      %s86 = sphi 0, %s84
      %s87 = sphi 0, %s86
      %s101 = sphi 0, %s87
      %s105 = sphi 0, %s105
      %s107 = sphi 0, %s105
      %s108 = sphi 0, %s107
      %s122 = sphi 0, %s108
      %s126 = sphi 0, %s126
      %s128 = sphi 0, %s126
      %s129 = sphi 0, %s128
      %s143 = sphi 0, %s129
      %s147 = sphi 0, %s147
      %s149 = sphi 0, %s147
      %s150 = sphi 0, %s149
      %s164 = sphi 0, %s150
      %s168 = sphi 0, %s168
      %s170 = sphi 0, %s168
      %s171 = sphi 0, %s170
      %s185 = sphi 0, %s171
      %s189 = sphi 0, %s189
      %s191 = sphi 0, %s189
      %s192 = sphi 0, %s191
      %s206 = sphi 0, %s192
      %s210 = sphi 0, %s210
      %s212 = sphi 0, %s210
      %s213 = sphi 0, %s212
      %s227 = sphi 0, %s213
      %s231 = sphi 0, %s231
      %s233 = sphi 0, %s231
      %s234 = sphi 0, %s233
      %s248 = sphi 0, %s234
      %s252 = sphi 0, %s252
      %s254 = sphi 0, %s252
      %s255 = sphi 0, %s254
      %s269 = sphi 0, %s255
      %s273 = sphi 0, %s273
      %s275 = sphi 0, %s273
      %s276 = sphi 0, %s275
      %s290 = sphi 0, %s276
      %s294 = sphi 0, %s294
      %s296 = sphi 0, %s294
      %s297 = sphi 0, %s296
      %s311 = sphi 0, %s297
      %s315 = sphi 0, %s315
      %s317 = sphi 0, %s315
      %s318 = sphi 0, %s317
      %s332 = sphi 0, %s318
      %s338 = sphi 0, %s340
      %s341 = sphi 0, %s338
      %s342 = sphi 0, %s341
      %s358 = sphi 0, %s342
    $region4: #{tpu_custom_call.1} parent=1 // loop_header_branch
      %27 = sbr.rel (%p25) target = $region8
    $region5: #{tpu_custom_call.1} parent=1 // loop_body
      %s29 = ssub.s32 %s24, 1
      %s30 = ssub.s32 %s24, 2
      %s31 = sadd.s32 %s24, 1
      %s32 = ssub.s32 %s24, %s31
      %p33 = scmp.eq.s32.totalorder %s32, 0
      %s35 = sadd.s32 %s34, 1
      %s36 = scalar_select %p33, %s34, %s35
      %p39 = pneg %p33
      %p40 = scmp.eq.s32.totalorder %s24, 3
      %p41 = por %p39, %p40
      %p42 = scmp.ne.s32.totalorder %s34, %s37
      %p43 = scmp.eq.s32.totalorder %s24, 0
      %p44 = por %p42, %p43
      %p45 = scmp.ne.s32.totalorder %s34, %s37
      %p46 = scmp.eq.s32.totalorder %s29, 3
      %p47 = por %p45, %p46
      %p48 = scmp.ne.s32.totalorder %s37, %s38
      %p49 = scmp.eq.s32.totalorder %s29, 0
      %p50 = por %p48, %p49
      %p51 = scmp.ne.s32.totalorder %s37, %s38
      %p52 = scmp.eq.s32.totalorder %s30, 3
      %p53 = por %p51, %p52
      %p55 = scmp.ne.s32.totalorder %s38, %s54
      %p56 = scmp.eq.s32.totalorder %s30, 0
      %p57 = por %p55, %p56
      %s58 = ssub.s32 %s24, %s31
      %p59 = scmp.eq.s32.totalorder %s58, 0
      %s61 = sadd.s32 %s60, 1
      %s62 = scalar_select %p59, %s60, %s61
      %p65 = pneg %p59
      %p66 = scmp.eq.s32.totalorder %s24, 3
      %p67 = por %p65, %p66
      %p68 = scmp.ne.s32.totalorder %s60, %s63
      %p69 = scmp.eq.s32.totalorder %s24, 0
      %p70 = por %p68, %p69
      %p71 = scmp.ne.s32.totalorder %s60, %s63
      %p72 = scmp.eq.s32.totalorder %s29, 3
      %p73 = por %p71, %p72
      %p74 = scmp.ne.s32.totalorder %s63, %s64
      %p75 = scmp.eq.s32.totalorder %s29, 0
      %p76 = por %p74, %p75
      %p77 = scmp.ne.s32.totalorder %s63, %s64
      %p78 = scmp.eq.s32.totalorder %s30, 3
      %p79 = por %p77, %p78
      %p81 = scmp.ne.s32.totalorder %s64, %s80
      %p82 = scmp.eq.s32.totalorder %s30, 0
      %p83 = por %p81, %p82
      %s85 = sadd.s32 %s84, 1
      %p88 = scmp.eq.s32.totalorder %s24, 3
      %p89 = scmp.ne.s32.totalorder %s84, %s86
      %p90 = scmp.eq.s32.totalorder %s24, 0
      %p91 = por %p89, %p90
      %p92 = scmp.ne.s32.totalorder %s84, %s86
      %p93 = scmp.eq.s32.totalorder %s29, 3
      %p94 = por %p92, %p93
      %p95 = scmp.ne.s32.totalorder %s86, %s87
      %p96 = scmp.eq.s32.totalorder %s29, 0
      %p97 = por %p95, %p96
      %p98 = scmp.ne.s32.totalorder %s86, %s87
      %p99 = scmp.eq.s32.totalorder %s30, 3
      %p100 = por %p98, %p99
      %p102 = scmp.ne.s32.totalorder %s87, %s101
      %p103 = scmp.eq.s32.totalorder %s30, 0
      %p104 = por %p102, %p103
      %s106 = sadd.s32 %s105, 1
      %p109 = scmp.eq.s32.totalorder %s24, 3
      %p110 = scmp.ne.s32.totalorder %s105, %s107
      %p111 = scmp.eq.s32.totalorder %s24, 0
      %p112 = por %p110, %p111
      %p113 = scmp.ne.s32.totalorder %s105, %s107
      %p114 = scmp.eq.s32.totalorder %s29, 3
      %p115 = por %p113, %p114
      %p116 = scmp.ne.s32.totalorder %s107, %s108
      %p117 = scmp.eq.s32.totalorder %s29, 0
      %p118 = por %p116, %p117
      %p119 = scmp.ne.s32.totalorder %s107, %s108
      %p120 = scmp.eq.s32.totalorder %s30, 3
      %p121 = por %p119, %p120
      %p123 = scmp.ne.s32.totalorder %s108, %s122
      %p124 = scmp.eq.s32.totalorder %s30, 0
      %p125 = por %p123, %p124
      %s127 = sadd.s32 %s126, 1
      %p130 = scmp.eq.s32.totalorder %s24, 3
      %p131 = scmp.ne.s32.totalorder %s126, %s128
      %p132 = scmp.eq.s32.totalorder %s24, 0
      %p133 = por %p131, %p132
      %p134 = scmp.ne.s32.totalorder %s126, %s128
      %p135 = scmp.eq.s32.totalorder %s29, 3
      %p136 = por %p134, %p135
      %p137 = scmp.ne.s32.totalorder %s128, %s129
      %p138 = scmp.eq.s32.totalorder %s29, 0
      %p139 = por %p137, %p138
      %p140 = scmp.ne.s32.totalorder %s128, %s129
      %p141 = scmp.eq.s32.totalorder %s30, 3
      %p142 = por %p140, %p141
      %p144 = scmp.ne.s32.totalorder %s129, %s143
      %p145 = scmp.eq.s32.totalorder %s30, 0
      %p146 = por %p144, %p145
      %s148 = sadd.s32 %s147, 1
      %p151 = scmp.eq.s32.totalorder %s24, 3
      %p152 = scmp.ne.s32.totalorder %s147, %s149
      %p153 = scmp.eq.s32.totalorder %s24, 0
      %p154 = por %p152, %p153
      %p155 = scmp.ne.s32.totalorder %s147, %s149
      %p156 = scmp.eq.s32.totalorder %s29, 3
      %p157 = por %p155, %p156
      %p158 = scmp.ne.s32.totalorder %s149, %s150
      %p159 = scmp.eq.s32.totalorder %s29, 0
      %p160 = por %p158, %p159
      %p161 = scmp.ne.s32.totalorder %s149, %s150
      %p162 = scmp.eq.s32.totalorder %s30, 3
      %p163 = por %p161, %p162
      %p165 = scmp.ne.s32.totalorder %s150, %s164
      %p166 = scmp.eq.s32.totalorder %s30, 0
      %p167 = por %p165, %p166
      %s169 = sadd.s32 %s168, 1
      %p172 = scmp.eq.s32.totalorder %s24, 3
      %p173 = scmp.ne.s32.totalorder %s168, %s170
      %p174 = scmp.eq.s32.totalorder %s24, 0
      %p175 = por %p173, %p174
      %p176 = scmp.ne.s32.totalorder %s168, %s170
      %p177 = scmp.eq.s32.totalorder %s29, 3
      %p178 = por %p176, %p177
      %p179 = scmp.ne.s32.totalorder %s170, %s171
      %p180 = scmp.eq.s32.totalorder %s29, 0
      %p181 = por %p179, %p180
      %p182 = scmp.ne.s32.totalorder %s170, %s171
      %p183 = scmp.eq.s32.totalorder %s30, 3
      %p184 = por %p182, %p183
      %p186 = scmp.ne.s32.totalorder %s171, %s185
      %p187 = scmp.eq.s32.totalorder %s30, 0
      %p188 = por %p186, %p187
      %s190 = sadd.s32 %s189, 1
      %p193 = scmp.eq.s32.totalorder %s24, 3
      %p194 = scmp.ne.s32.totalorder %s189, %s191
      %p195 = scmp.eq.s32.totalorder %s24, 0
      %p196 = por %p194, %p195
      %p197 = scmp.ne.s32.totalorder %s189, %s191
      %p198 = scmp.eq.s32.totalorder %s29, 3
      %p199 = por %p197, %p198
      %p200 = scmp.ne.s32.totalorder %s191, %s192
      %p201 = scmp.eq.s32.totalorder %s29, 0
      %p202 = por %p200, %p201
      %p203 = scmp.ne.s32.totalorder %s191, %s192
      %p204 = scmp.eq.s32.totalorder %s30, 3
      %p205 = por %p203, %p204
      %p207 = scmp.ne.s32.totalorder %s192, %s206
      %p208 = scmp.eq.s32.totalorder %s30, 0
      %p209 = por %p207, %p208
      %s211 = sadd.s32 %s210, 1
      %p214 = scmp.eq.s32.totalorder %s24, 3
      %p215 = scmp.ne.s32.totalorder %s210, %s212
      %p216 = scmp.eq.s32.totalorder %s24, 0
      %p217 = por %p215, %p216
      %p218 = scmp.ne.s32.totalorder %s210, %s212
      %p219 = scmp.eq.s32.totalorder %s29, 3
      %p220 = por %p218, %p219
      %p221 = scmp.ne.s32.totalorder %s212, %s213
      %p222 = scmp.eq.s32.totalorder %s29, 0
      %p223 = por %p221, %p222
      %p224 = scmp.ne.s32.totalorder %s212, %s213
      %p225 = scmp.eq.s32.totalorder %s30, 3
      %p226 = por %p224, %p225
      %p228 = scmp.ne.s32.totalorder %s213, %s227
      %p229 = scmp.eq.s32.totalorder %s30, 0
      %p230 = por %p228, %p229
      %s232 = sadd.s32 %s231, 1
      %p235 = scmp.eq.s32.totalorder %s24, 3
      %p236 = scmp.ne.s32.totalorder %s231, %s233
      %p237 = scmp.eq.s32.totalorder %s24, 0
      %p238 = por %p236, %p237
      %p239 = scmp.ne.s32.totalorder %s231, %s233
      %p240 = scmp.eq.s32.totalorder %s29, 3
      %p241 = por %p239, %p240
      %p242 = scmp.ne.s32.totalorder %s233, %s234
      %p243 = scmp.eq.s32.totalorder %s29, 0
      %p244 = por %p242, %p243
      %p245 = scmp.ne.s32.totalorder %s233, %s234
      %p246 = scmp.eq.s32.totalorder %s30, 3
      %p247 = por %p245, %p246
      %p249 = scmp.ne.s32.totalorder %s234, %s248
      %p250 = scmp.eq.s32.totalorder %s30, 0
      %p251 = por %p249, %p250
      %s253 = sadd.s32 %s252, 1
      %p256 = scmp.eq.s32.totalorder %s24, 3
      %p257 = scmp.ne.s32.totalorder %s252, %s254
      %p258 = scmp.eq.s32.totalorder %s24, 0
      %p259 = por %p257, %p258
      %p260 = scmp.ne.s32.totalorder %s252, %s254
      %p261 = scmp.eq.s32.totalorder %s29, 3
      %p262 = por %p260, %p261
      %p263 = scmp.ne.s32.totalorder %s254, %s255
      %p264 = scmp.eq.s32.totalorder %s29, 0
      %p265 = por %p263, %p264
      %p266 = scmp.ne.s32.totalorder %s254, %s255
      %p267 = scmp.eq.s32.totalorder %s30, 3
      %p268 = por %p266, %p267
      %p270 = scmp.ne.s32.totalorder %s255, %s269
      %p271 = scmp.eq.s32.totalorder %s30, 0
      %p272 = por %p270, %p271
      %s274 = sadd.s32 %s273, 1
      %p277 = scmp.eq.s32.totalorder %s24, 3
      %p278 = scmp.ne.s32.totalorder %s273, %s275
      %p279 = scmp.eq.s32.totalorder %s24, 0
      %p280 = por %p278, %p279
      %p281 = scmp.ne.s32.totalorder %s273, %s275
      %p282 = scmp.eq.s32.totalorder %s29, 3
      %p283 = por %p281, %p282
      %p284 = scmp.ne.s32.totalorder %s275, %s276
      %p285 = scmp.eq.s32.totalorder %s29, 0
      %p286 = por %p284, %p285
      %p287 = scmp.ne.s32.totalorder %s275, %s276
      %p288 = scmp.eq.s32.totalorder %s30, 3
      %p289 = por %p287, %p288
      %p291 = scmp.ne.s32.totalorder %s276, %s290
      %p292 = scmp.eq.s32.totalorder %s30, 0
      %p293 = por %p291, %p292
      %s295 = sadd.s32 %s294, 1
      %p298 = scmp.eq.s32.totalorder %s24, 3
      %p299 = scmp.ne.s32.totalorder %s294, %s296
      %p300 = scmp.eq.s32.totalorder %s24, 0
      %p301 = por %p299, %p300
      %p302 = scmp.ne.s32.totalorder %s294, %s296
      %p303 = scmp.eq.s32.totalorder %s29, 3
      %p304 = por %p302, %p303
      %p305 = scmp.ne.s32.totalorder %s296, %s297
      %p306 = scmp.eq.s32.totalorder %s29, 0
      %p307 = por %p305, %p306
      %p308 = scmp.ne.s32.totalorder %s296, %s297
      %p309 = scmp.eq.s32.totalorder %s30, 3
      %p310 = por %p308, %p309
      %p312 = scmp.ne.s32.totalorder %s297, %s311
      %p313 = scmp.eq.s32.totalorder %s30, 0
      %p314 = por %p312, %p313
      %s316 = sadd.s32 %s315, 1
      %p319 = scmp.eq.s32.totalorder %s24, 3
      %p320 = scmp.ne.s32.totalorder %s315, %s317
      %p321 = scmp.eq.s32.totalorder %s24, 0
      %p322 = por %p320, %p321
      %p323 = scmp.ne.s32.totalorder %s315, %s317
      %p324 = scmp.eq.s32.totalorder %s29, 3
      %p325 = por %p323, %p324
      %p326 = scmp.ne.s32.totalorder %s317, %s318
      %p327 = scmp.eq.s32.totalorder %s29, 0
      %p328 = por %p326, %p327
      %p329 = scmp.ne.s32.totalorder %s317, %s318
      %p330 = scmp.eq.s32.totalorder %s30, 3
      %p331 = por %p329, %p330
      %p333 = scmp.ne.s32.totalorder %s318, %s332
      %p334 = scmp.eq.s32.totalorder %s30, 0
      %p335 = por %p333, %p334
      %s336 = ssub.s32 %s24, %s31
      %p337 = scmp.eq.s32.totalorder %s336, 0
      %s339 = sadd.s32 %s338, 1
      %s340 = scalar_select %p337, %s338, %s339
      %p343 = pneg %p337
      %p344 = scmp.eq.s32.totalorder %s24, 3
      %p345 = por %p343, %p344
      %p346 = scmp.ne.s32.totalorder %s338, %s341
      %p347 = scmp.eq.s32.totalorder %s24, 0
      %p348 = por %p346, %p347
      %p349 = scmp.ne.s32.totalorder %s338, %s341
      %p350 = scmp.eq.s32.totalorder %s29, 3
      %p351 = por %p349, %p350
      %p352 = scmp.ne.s32.totalorder %s341, %s342
      %p353 = scmp.eq.s32.totalorder %s29, 0
      %p354 = por %p352, %p353
      %p355 = scmp.ne.s32.totalorder %s341, %s342
      %p356 = scmp.eq.s32.totalorder %s30, 3
      %p357 = por %p355, %p356
      %p359 = scmp.ne.s32.totalorder %s342, %s358
      %p360 = scmp.eq.s32.totalorder %s30, 0
      %p361 = por %p359, %p360
      %p362 = scmp.le.s32.totalorder 1, %s24
      %p363 = scmp.lt.s32.totalorder %s24, 5
      %p364 = pnand %p362, %p363
      %p365 = pneg %p364
      // Predicated region
      $region9: #{tpu_custom_call.1} parent=5 // pred_check
        _
      $region10: #{tpu_custom_call.1} parent=5 // pred_check_branch
        %367 = sbr.rel (%p364) target = $region12
      $region11: #{tpu_custom_call.1} parent=5 // pred_region
        %s368 = ssub.s32 %s24, 1
        // Predicated region
        $region13: #{tpu_custom_call.1} parent=11 // pred_check
          %p369 = pneg %p97
        $region14: #{tpu_custom_call.1} parent=11 // pred_check_branch
          %371 = sbr.rel (%p369) target = $region16
        $region15: #{tpu_custom_call.1} parent=11 // pred_region
          _
        $region16: #{tpu_custom_call.1} parent=11 // pred_fallthru
          _
        // Predicated region
        $region17: #{tpu_custom_call.1} parent=11 // pred_check
          %p372 = pneg %p118
        $region18: #{tpu_custom_call.1} parent=11 // pred_check_branch
          %374 = sbr.rel (%p372) target = $region20
        $region19: #{tpu_custom_call.1} parent=11 // pred_region
          _
        $region20: #{tpu_custom_call.1} parent=11 // pred_fallthru
          _
        // Predicated region
        $region21: #{tpu_custom_call.1} parent=11 // pred_check
          %p375 = pneg %p139
        $region22: #{tpu_custom_call.1} parent=11 // pred_check_branch
          %377 = sbr.rel (%p375) target = $region24
        $region23: #{tpu_custom_call.1} parent=11 // pred_region
          _
        $region24: #{tpu_custom_call.1} parent=11 // pred_fallthru
          _
        // Predicated region
        $region25: #{tpu_custom_call.1} parent=11 // pred_check
          %p378 = pneg %p160
        $region26: #{tpu_custom_call.1} parent=11 // pred_check_branch
          %380 = sbr.rel (%p378) target = $region28
        $region27: #{tpu_custom_call.1} parent=11 // pred_region
          _
        $region28: #{tpu_custom_call.1} parent=11 // pred_fallthru
          _
        // Predicated region
        $region29: #{tpu_custom_call.1} parent=11 // pred_check
          %p381 = pneg %p181
        $region30: #{tpu_custom_call.1} parent=11 // pred_check_branch
          %383 = sbr.rel (%p381) target = $region32
        $region31: #{tpu_custom_call.1} parent=11 // pred_region
          _
        $region32: #{tpu_custom_call.1} parent=11 // pred_fallthru
          _
        // Predicated region
        $region33: #{tpu_custom_call.1} parent=11 // pred_check
          %p384 = pneg %p202
        $region34: #{tpu_custom_call.1} parent=11 // pred_check_branch
          %386 = sbr.rel (%p384) target = $region36
        $region35: #{tpu_custom_call.1} parent=11 // pred_region
          _
        $region36: #{tpu_custom_call.1} parent=11 // pred_fallthru
          _
        // Predicated region
        $region37: #{tpu_custom_call.1} parent=11 // pred_check
          %p387 = pneg %p223
        $region38: #{tpu_custom_call.1} parent=11 // pred_check_branch
          %389 = sbr.rel (%p387) target = $region40
        $region39: #{tpu_custom_call.1} parent=11 // pred_region
          %391 = vsyncadd [#allocation3], 0
          %s392 = sshll.u32 %s8, 4
          %s393 = int_to_ptr.hbm [resolvable:$true] %s392
          %s394 = sshll.u32 [#allocation2], 4
          %s395 = int_to_ptr.vmem [resolvable:$true] %s394
          %400 = dma.hbm_to_vmem [thread:$0]  %s393, 32768, %s395, [#allocation3], 512, 512, 32
        $region40: #{tpu_custom_call.1} parent=11 // pred_fallthru
          _
        // Predicated region
        $region41: #{tpu_custom_call.1} parent=11 // pred_check
          %p401 = pneg %p244
        $region42: #{tpu_custom_call.1} parent=11 // pred_check_branch
          %403 = sbr.rel (%p401) target = $region44
        $region43: #{tpu_custom_call.1} parent=11 // pred_region
          _
        $region44: #{tpu_custom_call.1} parent=11 // pred_fallthru
          _
        // Predicated region
        $region45: #{tpu_custom_call.1} parent=11 // pred_check
          %p404 = pneg %p265
        $region46: #{tpu_custom_call.1} parent=11 // pred_check_branch
          %406 = sbr.rel (%p404) target = $region48
        $region47: #{tpu_custom_call.1} parent=11 // pred_region
          _
        $region48: #{tpu_custom_call.1} parent=11 // pred_fallthru
          _
        // Predicated region
        $region49: #{tpu_custom_call.1} parent=11 // pred_check
          %p407 = pneg %p286
        $region50: #{tpu_custom_call.1} parent=11 // pred_check_branch
          %409 = sbr.rel (%p407) target = $region52
        $region51: #{tpu_custom_call.1} parent=11 // pred_region
          _
        $region52: #{tpu_custom_call.1} parent=11 // pred_fallthru
          _
        // Predicated region
        $region53: #{tpu_custom_call.1} parent=11 // pred_check
          %p410 = pneg %p307
        $region54: #{tpu_custom_call.1} parent=11 // pred_check_branch
          %412 = sbr.rel (%p410) target = $region56
        $region55: #{tpu_custom_call.1} parent=11 // pred_region
          _
        $region56: #{tpu_custom_call.1} parent=11 // pred_fallthru
          _
        // Predicated region
        $region57: #{tpu_custom_call.1} parent=11 // pred_check
          %p413 = pneg %p328
        $region58: #{tpu_custom_call.1} parent=11 // pred_check_branch
          %415 = sbr.rel (%p413) target = $region60
        $region59: #{tpu_custom_call.1} parent=11 // pred_region
          _
        $region60: #{tpu_custom_call.1} parent=11 // pred_fallthru
          _
      $region12: #{tpu_custom_call.1} parent=5 // pred_fallthru
        _
      %p416 = scmp.lt.s32.totalorder %s24, 4
      // Predicated region
      $region61: #{tpu_custom_call.1} parent=5 // pred_check
        %p417 = pneg %p416
      $region62: #{tpu_custom_call.1} parent=5 // pred_check_branch
        %419 = sbr.rel (%p417) target = $region64
      $region63: #{tpu_custom_call.1} parent=5 // pred_region
        // Predicated region
        $region65: #{tpu_custom_call.1} parent=63 // pred_check
          %p420 = pneg %p44
        $region66: #{tpu_custom_call.1} parent=63 // pred_check_branch
          %422 = sbr.rel (%p420) target = $region68
        $region67: #{tpu_custom_call.1} parent=63 // pred_region
          %p423 = scmp.lt.s32.totalorder %s24, 3
          %s424 = scalar_select %p423, %s24, 3
          %s425 = smul.addr %s424, 8
          %s426 = scalar_lea.vmem %s0, %s425
        $region68: #{tpu_custom_call.1} parent=63 // pred_fallthru
          _
        // Predicated region
        $region69: #{tpu_custom_call.1} parent=63 // pred_check
          %p427 = pneg %p70
        $region70: #{tpu_custom_call.1} parent=63 // pred_check_branch
          %429 = sbr.rel (%p427) target = $region72
        $region71: #{tpu_custom_call.1} parent=63 // pred_region
          %p430 = scmp.lt.s32.totalorder %s24, 3
          %s431 = scalar_select %p430, %s24, 3
          %s432 = smul.addr %s431, 8
          %s433 = scalar_lea.vmem %s1, %s432
        $region72: #{tpu_custom_call.1} parent=63 // pred_fallthru
          _
      $region64: #{tpu_custom_call.1} parent=5 // pred_fallthru
        _
      %p434 = scmp.le.s32.totalorder 1, %s24
      %p435 = scmp.lt.s32.totalorder %s24, 5
      %p436 = pnand %p434, %p435
      %p437 = pneg %p436
      // Predicated region
      $region73: #{tpu_custom_call.1} parent=5 // pred_check
        _
      $region74: #{tpu_custom_call.1} parent=5 // pred_check_branch
        %439 = sbr.rel (%p436) target = $region76
      $region75: #{tpu_custom_call.1} parent=5 // pred_region
        %s440 = ssub.s32 %s24, 1
        // Predicated region
        $region77: #{tpu_custom_call.1} parent=75 // pred_check
          %p441 = pneg %p223
        $region78: #{tpu_custom_call.1} parent=75 // pred_check_branch
          %443 = sbr.rel (%p441) target = $region80
        $region79: #{tpu_custom_call.1} parent=75 // pred_region
          %445 = dma.done [#allocation3], 32768
        $region80: #{tpu_custom_call.1} parent=75 // pred_fallthru
          _
        %p446 = scmp.lt.s32.totalorder %s29, 3
        %s447 = scalar_select %p446, %s29, 3
        %s448 = smul.addr %s447, 8
        %s449 = scalar_lea.vmem %s0, %s448
        %p450 = pneg %p50
        %p451 = pneg %p47
        %p452 = scmp.lt.s32.totalorder %s29, 3
        %s453 = scalar_select %p452, %s29, 3
        %s454 = smul.addr %s453, 8
        %s455 = scalar_lea.vmem %s1, %s454
        %p456 = pneg %p76
        %p457 = pneg %p73
        %p458 = pneg %p97
        %p459 = pneg %p94
        %p460 = pneg %p118
        %p461 = pneg %p115
        %p462 = pneg %p139
        %p463 = pneg %p136
        %p464 = pneg %p160
        %p465 = pneg %p157
        %p466 = pneg %p181
        %p467 = pneg %p178
        %p468 = pneg %p202
        %p469 = pneg %p199
        %p470 = pneg %p223
        %p471 = pneg %p220
        %p472 = pneg %p244
        %p473 = pneg %p241
        %p474 = pneg %p265
        %p475 = pneg %p262
        %p476 = pneg %p286
        %p477 = pneg %p283
        %p478 = pneg %p307
        %p479 = pneg %p304
        %p480 = pneg %p328
        %p481 = pneg %p325
        %p482 = pneg %p354
        %p483 = pneg %p351
        %s484 = sand.u32 %s341, 1
        %s485 = scalar_lea.sflag [#allocation4], %s484
        %s486 = sand.u32 %s341, 1
        %s487 = smul.addr %s486, 8
        %s488 = scalar_lea.vmem [#allocation5], %s487
        %p489 = scmp.lt.s32.totalorder %s29, 3
        %s490 = scalar_select %p489, %s29, 3
        %s491 = smul.addr %s490, 8
        %s492 = scalar_lea.vmem %s0, %s491
        %p493 = scmp.lt.s32.totalorder %s29, 3
        %s494 = scalar_select %p493, %s29, 3
        %s495 = smul.addr %s494, 8
        %s496 = scalar_lea.vmem %s1, %s495
        %v497 = vld [vmem:[%s492] sm:$0xff]
        %v498 = vld [vmem:[%s496] sm:$0xff]
        %v499 = vlaneseq
        %v500 = vand.u32 %v499, 127
        %501 = vset.pattern.permute.xlu0 0
        %502 = vperm.xlu0 %501, %v498
        %v503 = vpop.permute.xlu0 %502
        %vm504 = vcmp.eq.s32.totalorder %v500, %v503
        %v505 = vsel %vm504, 1, 0
        %v506 = vcvt.s32.f32 %v505
        %v507 = vld [vmem:[%s2] sm:$0xff]
        %v508 = vld [vmem:[%s2 + $0x8] sm:$0x3]
        %vm509 = vcmask 80896
        %v511 = vsel %vm509, %v506, 0
        %vm513 = vcmask 1041408
        %v515 = vsel %vm513, %v508, 0
        %517 = vmatpush.msra.mxu0 0.0
        %518 = vmatpush.msra.mxu0 0.0
        %519 = vmatpush.msra.mxu0 0.0
        %520 = vmatpush.msra.mxu0 0.0
        %521 = vmatpush.msra.mxu0 0.0
        %522 = vmatpush.msra.mxu0 0.0
        %523 = vmatpush.msra.mxu0 0.0
        %524 = vmatpush.msra.mxu0 0.0
        %525 = vmatpush.msra.mxu0 0.0
        %526 = vmatpush.msra.mxu0 0.0
        %527 = vmatpush.msra.mxu0 0.0
        %528 = vmatpush.msra.mxu0 0.0
        %529 = vmatpush.msra.mxu0 0.0
        %530 = vmatpush.msra.mxu0 0.0
        %531 = vmatpush.msra.mxu0 %v515
        %532 = vmatpush.msra.mxu0 %v507
        %533 = vmatmul.f32.gmra.mxu0 %v511
        %v534 = vpop.f32.mrf.mxu0
        %v535 = vadd.f32 0.0, %v534
        %536 = vdwg.mxu0
        %v537 = vld [vmem:[%s3] sm:$0xff]
        %v538 = vld [vmem:[%s3 + $0x8] sm:$0xff]
        %v539 = vld [vmem:[%s3 + $0x10] sm:$0xff]
        %v540 = vld [vmem:[%s3 + $0x18] sm:$0xff]
        %v541 = vld [vmem:[%s3 + $0x20] sm:$0xff]
        %v542 = vld [vmem:[%s3 + $0x28] sm:$0xff]
        %v543 = vld [vmem:[%s3 + $0x30] sm:$0xff]
        %v544 = vld [vmem:[%s3 + $0x38] sm:$0xff]
        %v545 = vld [vmem:[%s3 + $0x40] sm:$0xff]
        %v546 = vld [vmem:[%s3 + $0x48] sm:$0xff]
        %v547 = vld [vmem:[%s3 + $0x50] sm:$0xff]
        %v548 = vld [vmem:[%s3 + $0x58] sm:$0xff]
        %v549 = vld [vmem:[%s3 + $0x60] sm:$0xff]
        %v550 = vld [vmem:[%s3 + $0x68] sm:$0xff]
        %v551 = vld [vmem:[%s3 + $0x70] sm:$0xff]
        %v552 = vld [vmem:[%s3 + $0x78] sm:$0xff]
        %v553 = vld [vmem:[%s4] sm:$0xff]
        %v554 = vld [vmem:[%s4 + $0x8] sm:$0xff]
        %v555 = vld [vmem:[%s4 + $0x10] sm:$0xff]
        %v556 = vld [vmem:[%s4 + $0x18] sm:$0xff]
        %v557 = vld [vmem:[%s4 + $0x20] sm:$0xff]
        %v558 = vld [vmem:[%s4 + $0x28] sm:$0xff]
        %v559 = vld [vmem:[%s4 + $0x30] sm:$0xff]
        %v560 = vld [vmem:[%s4 + $0x38] sm:$0xff]
        %v561 = vld [vmem:[%s4 + $0x40] sm:$0xff]
        %v562 = vld [vmem:[%s4 + $0x48] sm:$0xff]
        %v563 = vld [vmem:[%s4 + $0x50] sm:$0xff]
        %v564 = vld [vmem:[%s4 + $0x58] sm:$0xff]
        %v565 = vld [vmem:[%s4 + $0x60] sm:$0xff]
        %v566 = vld [vmem:[%s4 + $0x68] sm:$0xff]
        %v567 = vld [vmem:[%s4 + $0x70] sm:$0xff]
        %v568 = vld [vmem:[%s4 + $0x78] sm:$0xff]
        %v569 = vld [vmem:[%s4 + $0x80] sm:$0xff]
        %v570 = vld [vmem:[%s4 + $0x88] sm:$0xff]
        %v571 = vld [vmem:[%s4 + $0x90] sm:$0xff]
        %v572 = vld [vmem:[%s4 + $0x98] sm:$0xff]
        %v573 = vld [vmem:[%s4 + $0xa0] sm:$0xff]
        %v574 = vld [vmem:[%s4 + $0xa8] sm:$0xff]
        %v575 = vld [vmem:[%s4 + $0xb0] sm:$0xff]
        %v576 = vld [vmem:[%s4 + $0xb8] sm:$0xff]
        %v577 = vld [vmem:[%s4 + $0xc0] sm:$0x3]
        %v578 = vld [vmem:[%s4 + $0xc8] sm:$0x3]
        %v579 = vld [vmem:[%s4 + $0xd0] sm:$0x3]
        %v580 = vld [vmem:[%s4 + $0xd8] sm:$0x3]
        %vm581 = vcmask 408576
        %v583 = vsel %vm581, %v535, 0
        %v586 = vsel %vm513, %v577, 0
        %v589 = vsel %vm513, %v578, 0
        %v592 = vsel %vm513, %v579, 0
        %v595 = vsel %vm513, %v580, 0
        %597 = vmatpush.msra.mxu0 0.0
        %598 = vmatpush.msra.mxu0 0.0
        %599 = vmatpush.msra.mxu0 0.0
        %600 = vmatpush.msra.mxu0 0.0
        %601 = vmatpush.msra.mxu0 0.0
        %602 = vmatpush.msra.mxu0 0.0
        %603 = vmatpush.msra.mxu0 0.0
        %604 = vmatpush.msra.mxu0 0.0
        %605 = vmatpush.msra.mxu0 0.0
        %606 = vmatpush.msra.mxu0 %v586
        %607 = vmatpush.msra.mxu0 %v573
        %608 = vmatpush.msra.mxu0 %v569
        %609 = vmatpush.msra.mxu0 %v565
        %610 = vmatpush.msra.mxu0 %v561
        %611 = vmatpush.msra.mxu0 %v557
        %612 = vmatpush.msra.mxu0 %v553
        %613 = vmatmul.f32.gmra.mxu0 %v583
        %v614 = vpop.f32.mrf.mxu0
        %v615 = vadd.f32 0.0, %v614
        %616 = vdwg.mxu0
        %617 = vmatpush.msra.mxu0 0.0
        %618 = vmatpush.msra.mxu0 0.0
        %619 = vmatpush.msra.mxu0 0.0
        %620 = vmatpush.msra.mxu0 0.0
        %621 = vmatpush.msra.mxu0 0.0
        %622 = vmatpush.msra.mxu0 0.0
        %623 = vmatpush.msra.mxu0 0.0
        %624 = vmatpush.msra.mxu0 0.0
        %625 = vmatpush.msra.mxu0 0.0
        %626 = vmatpush.msra.mxu0 %v589
        %627 = vmatpush.msra.mxu0 %v574
        %628 = vmatpush.msra.mxu0 %v570
        %629 = vmatpush.msra.mxu0 %v566
        %630 = vmatpush.msra.mxu0 %v562
        %631 = vmatpush.msra.mxu0 %v558
        %632 = vmatpush.msra.mxu0 %v554
        %633 = vmatmul.f32.gmra.mxu0 %v583
        %v634 = vpop.f32.mrf.mxu0
        %v635 = vadd.f32 0.0, %v634
        %636 = vdwg.mxu0
        %637 = vmatpush.msra.mxu0 0.0
        %638 = vmatpush.msra.mxu0 0.0
        %639 = vmatpush.msra.mxu0 0.0
        %640 = vmatpush.msra.mxu0 0.0
        %641 = vmatpush.msra.mxu0 0.0
        %642 = vmatpush.msra.mxu0 0.0
        %643 = vmatpush.msra.mxu0 0.0
        %644 = vmatpush.msra.mxu0 0.0
        %645 = vmatpush.msra.mxu0 0.0
        %646 = vmatpush.msra.mxu0 %v592
        %647 = vmatpush.msra.mxu0 %v575
        %648 = vmatpush.msra.mxu0 %v571
        %649 = vmatpush.msra.mxu0 %v567
        %650 = vmatpush.msra.mxu0 %v563
        %651 = vmatpush.msra.mxu0 %v559
        %652 = vmatpush.msra.mxu0 %v555
        %653 = vmatmul.f32.gmra.mxu0 %v583
        %v654 = vpop.f32.mrf.mxu0
        %v655 = vadd.f32 0.0, %v654
        %656 = vdwg.mxu0
        %657 = vmatpush.msra.mxu0 0.0
        %658 = vmatpush.msra.mxu0 0.0
        %659 = vmatpush.msra.mxu0 0.0
        %660 = vmatpush.msra.mxu0 0.0
        %661 = vmatpush.msra.mxu0 0.0
        %662 = vmatpush.msra.mxu0 0.0
        %663 = vmatpush.msra.mxu0 0.0
        %664 = vmatpush.msra.mxu0 0.0
        %665 = vmatpush.msra.mxu0 0.0
        %666 = vmatpush.msra.mxu0 %v595
        %667 = vmatpush.msra.mxu0 %v576
        %668 = vmatpush.msra.mxu0 %v572
        %669 = vmatpush.msra.mxu0 %v568
        %670 = vmatpush.msra.mxu0 %v564
        %671 = vmatpush.msra.mxu0 %v560
        %672 = vmatpush.msra.mxu0 %v556
        %673 = vmatmul.f32.gmra.mxu0 %v583
        %v674 = vpop.f32.mrf.mxu0
        %v675 = vadd.f32 0.0, %v674
        %676 = vdwg.mxu0
        %vm677 = vcmask 261120
        %v679 = vsel %vm677, %v497, 0
        %681 = vmatpush.msra.mxu0 0.0
        %682 = vmatpush.msra.mxu0 0.0
        %683 = vmatpush.msra.mxu0 0.0
        %684 = vmatpush.msra.mxu0 0.0
        %685 = vmatpush.msra.mxu0 0.0
        %686 = vmatpush.msra.mxu0 0.0
        %687 = vmatpush.msra.mxu0 0.0
        %688 = vmatpush.msra.mxu0 0.0
        %689 = vmatpush.msra.mxu0 0.0
        %690 = vmatpush.msra.mxu0 0.0
        %691 = vmatpush.msra.mxu0 0.0
        %692 = vmatpush.msra.mxu0 0.0
        %693 = vmatpush.msra.mxu0 %v549
        %694 = vmatpush.msra.mxu0 %v545
        %695 = vmatpush.msra.mxu0 %v541
        %696 = vmatpush.msra.mxu0 %v537
        %697 = vmatmul.f32.gmra.mxu0 %v679
        %v698 = vpop.f32.mrf.mxu0
        %v699 = vadd.f32 %v615, %v698
        %700 = vdwg.mxu0
        %701 = vmatpush.msra.mxu0 0.0
        %702 = vmatpush.msra.mxu0 0.0
        %703 = vmatpush.msra.mxu0 0.0
        %704 = vmatpush.msra.mxu0 0.0
        %705 = vmatpush.msra.mxu0 0.0
        %706 = vmatpush.msra.mxu0 0.0
        %707 = vmatpush.msra.mxu0 0.0
        %708 = vmatpush.msra.mxu0 0.0
        %709 = vmatpush.msra.mxu0 0.0
        %710 = vmatpush.msra.mxu0 0.0
        %711 = vmatpush.msra.mxu0 0.0
        %712 = vmatpush.msra.mxu0 0.0
        %713 = vmatpush.msra.mxu0 %v550
        %714 = vmatpush.msra.mxu0 %v546
        %715 = vmatpush.msra.mxu0 %v542
        %716 = vmatpush.msra.mxu0 %v538
        %717 = vmatmul.f32.gmra.mxu0 %v679
        %v718 = vpop.f32.mrf.mxu0
        %v719 = vadd.f32 %v635, %v718
        %720 = vdwg.mxu0
        %721 = vmatpush.msra.mxu0 0.0
        %722 = vmatpush.msra.mxu0 0.0
        %723 = vmatpush.msra.mxu0 0.0
        %724 = vmatpush.msra.mxu0 0.0
        %725 = vmatpush.msra.mxu0 0.0
        %726 = vmatpush.msra.mxu0 0.0
        %727 = vmatpush.msra.mxu0 0.0
        %728 = vmatpush.msra.mxu0 0.0
        %729 = vmatpush.msra.mxu0 0.0
        %730 = vmatpush.msra.mxu0 0.0
        %731 = vmatpush.msra.mxu0 0.0
        %732 = vmatpush.msra.mxu0 0.0
        %733 = vmatpush.msra.mxu0 %v551
        %734 = vmatpush.msra.mxu0 %v547
        %735 = vmatpush.msra.mxu0 %v543
        %736 = vmatpush.msra.mxu0 %v539
        %737 = vmatmul.f32.gmra.mxu0 %v679
        %v738 = vpop.f32.mrf.mxu0
        %v739 = vadd.f32 %v655, %v738
        %740 = vdwg.mxu0
        %741 = vmatpush.msra.mxu0 0.0
        %742 = vmatpush.msra.mxu0 0.0
        %743 = vmatpush.msra.mxu0 0.0
        %744 = vmatpush.msra.mxu0 0.0
        %745 = vmatpush.msra.mxu0 0.0
        %746 = vmatpush.msra.mxu0 0.0
        %747 = vmatpush.msra.mxu0 0.0
        %748 = vmatpush.msra.mxu0 0.0
        %749 = vmatpush.msra.mxu0 0.0
        %750 = vmatpush.msra.mxu0 0.0
        %751 = vmatpush.msra.mxu0 0.0
        %752 = vmatpush.msra.mxu0 0.0
        %753 = vmatpush.msra.mxu0 %v552
        %754 = vmatpush.msra.mxu0 %v548
        %755 = vmatpush.msra.mxu0 %v544
        %756 = vmatpush.msra.mxu0 %v540
        %757 = vmatmul.f32.gmra.mxu0 %v679
        %v758 = vpop.f32.mrf.mxu0
        %v759 = vadd.f32 %v675, %v758
        %760 = vdwg.mxu0
        %v761 = vld [vmem:[%s5] sm:$0xf]
        %v763 = vperm.slane %v761, 0
        %v764 = vperm.slane %v761, 1
        %v765 = vperm.slane %v761, 2
        %v766 = vperm.slane %v761, 3
        %v771 = vadd.f32 %v699, %v763
        %v772 = vadd.f32 %v719, %v764
        %v773 = vadd.f32 %v739, %v765
        %v774 = vadd.f32 %v759, %v766
        %v775 = vld [vmem:[%s6] sm:$0xf]
        %v776 = vld [vmem:[%s7] sm:$0xf]
        %v777 = vrot.slane %v771, 4
        %v778 = vadd.f32 %v771, %v777
        %v779 = vrot.slane %v778, 2
        %v780 = vadd.f32 %v778, %v779
        %v781 = vrot.slane %v780, 1
        %v782 = vadd.f32 %v780, %v781
        %v783 = vrot.slane %v772, 4
        %v784 = vadd.f32 %v772, %v783
        %v785 = vrot.slane %v784, 2
        %v786 = vadd.f32 %v784, %v785
        %v787 = vrot.slane %v786, 1
        %v788 = vadd.f32 %v786, %v787
        %v789 = vrot.slane %v773, 4
        %v790 = vadd.f32 %v773, %v789
        %v791 = vrot.slane %v790, 2
        %v792 = vadd.f32 %v790, %v791
        %v793 = vrot.slane %v792, 1
        %v794 = vadd.f32 %v792, %v793
        %v795 = vrot.slane %v774, 4
        %v796 = vadd.f32 %v774, %v795
        %v797 = vrot.slane %v796, 2
        %v798 = vadd.f32 %v796, %v797
        %v799 = vrot.slane %v798, 1
        %v800 = vadd.f32 %v798, %v799
        %v801 = vrcp.pop 8.0
        %v802 = vmul.f32 8.0, %v801
        %v803 = vsub.f32 1.0, %v802
        %v804 = vmul.f32 %v801, %v803
        %v805 = vadd.f32 %v801, %v804
        %vm806 = vweird.f32 %v801
        %v807 = vsel %vm806, %v801, %v805
        %v808 = vmul.f32 %v782, %v807
        %v809 = vmul.f32 %v788, %v807
        %v810 = vmul.f32 %v794, %v807
        %v811 = vmul.f32 %v800, %v807
        %v812 = vmul.f32 %v771, %v771
        %v813 = vmul.f32 %v772, %v772
        %v814 = vmul.f32 %v773, %v773
        %v815 = vmul.f32 %v774, %v774
        %v816 = vrot.slane %v812, 4
        %v817 = vadd.f32 %v812, %v816
        %v818 = vrot.slane %v817, 2
        %v819 = vadd.f32 %v817, %v818
        %v820 = vrot.slane %v819, 1
        %v821 = vadd.f32 %v819, %v820
        %v822 = vrot.slane %v813, 4
        %v823 = vadd.f32 %v813, %v822
        %v824 = vrot.slane %v823, 2
        %v825 = vadd.f32 %v823, %v824
        %v826 = vrot.slane %v825, 1
        %v827 = vadd.f32 %v825, %v826
        %v828 = vrot.slane %v814, 4
        %v829 = vadd.f32 %v814, %v828
        %v830 = vrot.slane %v829, 2
        %v831 = vadd.f32 %v829, %v830
        %v832 = vrot.slane %v831, 1
        %v833 = vadd.f32 %v831, %v832
        %v834 = vrot.slane %v815, 4
        %v835 = vadd.f32 %v815, %v834
        %v836 = vrot.slane %v835, 2
        %v837 = vadd.f32 %v835, %v836
        %v838 = vrot.slane %v837, 1
        %v839 = vadd.f32 %v837, %v838
        %v840 = vmul.f32 %v821, %v807
        %v841 = vmul.f32 %v827, %v807
        %v842 = vmul.f32 %v833, %v807
        %v843 = vmul.f32 %v839, %v807
        %v844 = vmul.f32 %v808, %v808
        %v845 = vmul.f32 %v809, %v809
        %v846 = vmul.f32 %v810, %v810
        %v847 = vmul.f32 %v811, %v811
        %v848 = vsub.f32 %v840, %v844
        %v849 = vsub.f32 %v841, %v845
        %v850 = vsub.f32 %v842, %v846
        %v851 = vsub.f32 %v843, %v847
        %v852 = vmax.f32 %v848, 0.0
        %v853 = vmax.f32 %v849, 0.0
        %v854 = vmax.f32 %v850, 0.0
        %v855 = vmax.f32 %v851, 0.0
        %v856 = vsub.f32 %v771, %v808
        %v857 = vsub.f32 %v772, %v809
        %v858 = vsub.f32 %v773, %v810
        %v859 = vsub.f32 %v774, %v811
        %v860 = vadd.f32 %v852, 1e-05
        %v861 = vadd.f32 %v853, 1e-05
        %v862 = vadd.f32 %v854, 1e-05
        %v863 = vadd.f32 %v855, 1e-05
        %v864 = vrsqrt.pop %v860
        %v865 = vmul.f32 %v864, %v860
        %v866 = vmul.f32 %v865, %v864
        %v867 = vmul.f32 0.5, %v866
        %v868 = vsub.f32 1.5, %v867
        %v869 = vmul.f32 %v864, %v868
        %vm870 = vweird.f32 %v860
        %vm871 = vweird.f32 %v864
        %vm872 = vmor %vm870, %vm871
        %v873 = vsel %vm872, %v864, %v869
        %v874 = vrsqrt.pop %v861
        %v875 = vmul.f32 %v874, %v861
        %v876 = vmul.f32 %v875, %v874
        %v877 = vmul.f32 0.5, %v876
        %v878 = vsub.f32 1.5, %v877
        %v879 = vmul.f32 %v874, %v878
        %vm880 = vweird.f32 %v861
        %vm881 = vweird.f32 %v874
        %vm882 = vmor %vm880, %vm881
        %v883 = vsel %vm882, %v874, %v879
        %v884 = vrsqrt.pop %v862
        %v885 = vmul.f32 %v884, %v862
        %v886 = vmul.f32 %v885, %v884
        %v887 = vmul.f32 0.5, %v886
        %v888 = vsub.f32 1.5, %v887
        %v889 = vmul.f32 %v884, %v888
        %vm890 = vweird.f32 %v862
        %vm891 = vweird.f32 %v884
        %vm892 = vmor %vm890, %vm891
        %v893 = vsel %vm892, %v884, %v889
        %v894 = vrsqrt.pop %v863
        %v895 = vmul.f32 %v894, %v863
        %v896 = vmul.f32 %v895, %v894
        %v897 = vmul.f32 0.5, %v896
        %v898 = vsub.f32 1.5, %v897
        %v899 = vmul.f32 %v894, %v898
        %vm900 = vweird.f32 %v863
        %vm901 = vweird.f32 %v894
        %vm902 = vmor %vm900, %vm901
        %v903 = vsel %vm902, %v894, %v899
        %v904 = vmul.f32 %v856, %v873
        %v905 = vmul.f32 %v857, %v883
        %v906 = vmul.f32 %v858, %v893
        %v907 = vmul.f32 %v859, %v903
        %v909 = vperm.slane %v775, 0
        %v910 = vperm.slane %v775, 1
        %v911 = vperm.slane %v775, 2
        %v912 = vperm.slane %v775, 3
        %v917 = vmul.f32 %v904, %v909
        %v918 = vmul.f32 %v905, %v910
        %v919 = vmul.f32 %v906, %v911
        %v920 = vmul.f32 %v907, %v912
        %v922 = vperm.slane %v776, 0
        %v923 = vperm.slane %v776, 1
        %v924 = vperm.slane %v776, 2
        %v925 = vperm.slane %v776, 3
        %v930 = vadd.f32 %v917, %v922
        %v931 = vadd.f32 %v918, %v923
        %v932 = vadd.f32 %v919, %v924
        %v933 = vadd.f32 %v920, %v925
        %v934 = vmax.f32 %v930, 0.0
        %v935 = vmax.f32 %v931, 0.0
        %v936 = vmax.f32 %v932, 0.0
        %v937 = vmax.f32 %v933, 0.0
        %v938 = vld [vmem:[#allocation2] sm:$0xff]
        %v939 = vld [vmem:[#allocation2 + $0x8] sm:$0xff]
        %v940 = vld [vmem:[#allocation2 + $0x10] sm:$0xff]
        %v941 = vld [vmem:[#allocation2 + $0x18] sm:$0xff]
        %v942 = vld [vmem:[#allocation2 + $0x20] sm:$0xff]
        %v943 = vld [vmem:[#allocation2 + $0x28] sm:$0xff]
        %v944 = vld [vmem:[#allocation2 + $0x30] sm:$0xff]
        %v945 = vld [vmem:[#allocation2 + $0x38] sm:$0xff]
        %v946 = vld [vmem:[#allocation2 + $0x40] sm:$0xff]
        %v947 = vld [vmem:[#allocation2 + $0x48] sm:$0xff]
        %v948 = vld [vmem:[#allocation2 + $0x50] sm:$0xff]
        %v949 = vld [vmem:[#allocation2 + $0x58] sm:$0xff]
        %v950 = vld [vmem:[#allocation2 + $0x60] sm:$0xff]
        %v951 = vld [vmem:[#allocation2 + $0x68] sm:$0xff]
        %v952 = vld [vmem:[#allocation2 + $0x70] sm:$0xff]
        %v953 = vld [vmem:[#allocation2 + $0x78] sm:$0xff]
        %v954 = vld [vmem:[#allocation2 + $0x80] sm:$0xff]
        %v955 = vld [vmem:[#allocation2 + $0x88] sm:$0xff]
        %v956 = vld [vmem:[#allocation2 + $0x90] sm:$0xff]
        %v957 = vld [vmem:[#allocation2 + $0x98] sm:$0xff]
        %v958 = vld [vmem:[#allocation2 + $0xa0] sm:$0xff]
        %v959 = vld [vmem:[#allocation2 + $0xa8] sm:$0xff]
        %v960 = vld [vmem:[#allocation2 + $0xb0] sm:$0xff]
        %v961 = vld [vmem:[#allocation2 + $0xb8] sm:$0xff]
        %v962 = vld [vmem:[#allocation2 + $0xc0] sm:$0xff]
        %v963 = vld [vmem:[#allocation2 + $0xc8] sm:$0xff]
        %v964 = vld [vmem:[#allocation2 + $0xd0] sm:$0xff]
        %v965 = vld [vmem:[#allocation2 + $0xd8] sm:$0xff]
        %v966 = vld [vmem:[#allocation2 + $0xe0] sm:$0xff]
        %v967 = vld [vmem:[#allocation2 + $0xe8] sm:$0xff]
        %v968 = vld [vmem:[#allocation2 + $0xf0] sm:$0xff]
        %v969 = vld [vmem:[#allocation2 + $0xf8] sm:$0xff]
        %v970 = vld [vmem:[#allocation2 + $0x100] sm:$0xff]
        %v971 = vld [vmem:[#allocation2 + $0x108] sm:$0xff]
        %v972 = vld [vmem:[#allocation2 + $0x110] sm:$0xff]
        %v973 = vld [vmem:[#allocation2 + $0x118] sm:$0xff]
        %v974 = vld [vmem:[#allocation2 + $0x120] sm:$0xff]
        %v975 = vld [vmem:[#allocation2 + $0x128] sm:$0xff]
        %v976 = vld [vmem:[#allocation2 + $0x130] sm:$0xff]
        %v977 = vld [vmem:[#allocation2 + $0x138] sm:$0xff]
        %v978 = vld [vmem:[#allocation2 + $0x140] sm:$0xff]
        %v979 = vld [vmem:[#allocation2 + $0x148] sm:$0xff]
        %v980 = vld [vmem:[#allocation2 + $0x150] sm:$0xff]
        %v981 = vld [vmem:[#allocation2 + $0x158] sm:$0xff]
        %v982 = vld [vmem:[#allocation2 + $0x160] sm:$0xff]
        %v983 = vld [vmem:[#allocation2 + $0x168] sm:$0xff]
        %v984 = vld [vmem:[#allocation2 + $0x170] sm:$0xff]
        %v985 = vld [vmem:[#allocation2 + $0x178] sm:$0xff]
        %v986 = vld [vmem:[#allocation2 + $0x180] sm:$0xff]
        %v987 = vld [vmem:[#allocation2 + $0x188] sm:$0xff]
        %v988 = vld [vmem:[#allocation2 + $0x190] sm:$0xff]
        %v989 = vld [vmem:[#allocation2 + $0x198] sm:$0xff]
        %v990 = vld [vmem:[#allocation2 + $0x1a0] sm:$0xff]
        %v991 = vld [vmem:[#allocation2 + $0x1a8] sm:$0xff]
        %v992 = vld [vmem:[#allocation2 + $0x1b0] sm:$0xff]
        %v993 = vld [vmem:[#allocation2 + $0x1b8] sm:$0xff]
        %v994 = vld [vmem:[#allocation2 + $0x1c0] sm:$0xff]
        %v995 = vld [vmem:[#allocation2 + $0x1c8] sm:$0xff]
        %v996 = vld [vmem:[#allocation2 + $0x1d0] sm:$0xff]
        %v997 = vld [vmem:[#allocation2 + $0x1d8] sm:$0xff]
        %v998 = vld [vmem:[#allocation2 + $0x1e0] sm:$0xff]
        %v999 = vld [vmem:[#allocation2 + $0x1e8] sm:$0xff]
        %v1000 = vld [vmem:[#allocation2 + $0x1f0] sm:$0xff]
        %v1001 = vld [vmem:[#allocation2 + $0x1f8] sm:$0xff]
        %v1002 = vld [vmem:[#allocation2 + $0x200] sm:$0xff]
        %v1003 = vld [vmem:[#allocation2 + $0x208] sm:$0xff]
        %v1004 = vld [vmem:[#allocation2 + $0x210] sm:$0xff]
        %v1005 = vld [vmem:[#allocation2 + $0x218] sm:$0xff]
        %v1006 = vld [vmem:[#allocation2 + $0x220] sm:$0xff]
        %v1007 = vld [vmem:[#allocation2 + $0x228] sm:$0xff]
        %v1008 = vld [vmem:[#allocation2 + $0x230] sm:$0xff]
        %v1009 = vld [vmem:[#allocation2 + $0x238] sm:$0xff]
        %v1010 = vld [vmem:[#allocation2 + $0x240] sm:$0xff]
        %v1011 = vld [vmem:[#allocation2 + $0x248] sm:$0xff]
        %v1012 = vld [vmem:[#allocation2 + $0x250] sm:$0xff]
        %v1013 = vld [vmem:[#allocation2 + $0x258] sm:$0xff]
        %v1014 = vld [vmem:[#allocation2 + $0x260] sm:$0xff]
        %v1015 = vld [vmem:[#allocation2 + $0x268] sm:$0xff]
        %v1016 = vld [vmem:[#allocation2 + $0x270] sm:$0xff]
        %v1017 = vld [vmem:[#allocation2 + $0x278] sm:$0xff]
        %v1018 = vld [vmem:[#allocation2 + $0x280] sm:$0xff]
        %v1019 = vld [vmem:[#allocation2 + $0x288] sm:$0xff]
        %v1020 = vld [vmem:[#allocation2 + $0x290] sm:$0xff]
        %v1021 = vld [vmem:[#allocation2 + $0x298] sm:$0xff]
        %v1022 = vld [vmem:[#allocation2 + $0x2a0] sm:$0xff]
        %v1023 = vld [vmem:[#allocation2 + $0x2a8] sm:$0xff]
        %v1024 = vld [vmem:[#allocation2 + $0x2b0] sm:$0xff]
        %v1025 = vld [vmem:[#allocation2 + $0x2b8] sm:$0xff]
        %v1026 = vld [vmem:[#allocation2 + $0x2c0] sm:$0xff]
        %v1027 = vld [vmem:[#allocation2 + $0x2c8] sm:$0xff]
        %v1028 = vld [vmem:[#allocation2 + $0x2d0] sm:$0xff]
        %v1029 = vld [vmem:[#allocation2 + $0x2d8] sm:$0xff]
        %v1030 = vld [vmem:[#allocation2 + $0x2e0] sm:$0xff]
        %v1031 = vld [vmem:[#allocation2 + $0x2e8] sm:$0xff]
        %v1032 = vld [vmem:[#allocation2 + $0x2f0] sm:$0xff]
        %v1033 = vld [vmem:[#allocation2 + $0x2f8] sm:$0xff]
        %v1034 = vld [vmem:[#allocation2 + $0x300] sm:$0xff]
        %v1035 = vld [vmem:[#allocation2 + $0x308] sm:$0xff]
        %v1036 = vld [vmem:[#allocation2 + $0x310] sm:$0xff]
        %v1037 = vld [vmem:[#allocation2 + $0x318] sm:$0xff]
        %v1038 = vld [vmem:[#allocation2 + $0x320] sm:$0xff]
        %v1039 = vld [vmem:[#allocation2 + $0x328] sm:$0xff]
        %v1040 = vld [vmem:[#allocation2 + $0x330] sm:$0xff]
        %v1041 = vld [vmem:[#allocation2 + $0x338] sm:$0xff]
        %v1042 = vld [vmem:[#allocation2 + $0x340] sm:$0xff]
        %v1043 = vld [vmem:[#allocation2 + $0x348] sm:$0xff]
        %v1044 = vld [vmem:[#allocation2 + $0x350] sm:$0xff]
        %v1045 = vld [vmem:[#allocation2 + $0x358] sm:$0xff]
        %v1046 = vld [vmem:[#allocation2 + $0x360] sm:$0xff]
        %v1047 = vld [vmem:[#allocation2 + $0x368] sm:$0xff]
        %v1048 = vld [vmem:[#allocation2 + $0x370] sm:$0xff]
        %v1049 = vld [vmem:[#allocation2 + $0x378] sm:$0xff]
        %v1050 = vld [vmem:[#allocation2 + $0x380] sm:$0xff]
        %v1051 = vld [vmem:[#allocation2 + $0x388] sm:$0xff]
        %v1052 = vld [vmem:[#allocation2 + $0x390] sm:$0xff]
        %v1053 = vld [vmem:[#allocation2 + $0x398] sm:$0xff]
        %v1054 = vld [vmem:[#allocation2 + $0x3a0] sm:$0xff]
        %v1055 = vld [vmem:[#allocation2 + $0x3a8] sm:$0xff]
        %v1056 = vld [vmem:[#allocation2 + $0x3b0] sm:$0xff]
        %v1057 = vld [vmem:[#allocation2 + $0x3b8] sm:$0xff]
        %v1058 = vld [vmem:[#allocation2 + $0x3c0] sm:$0xff]
        %v1059 = vld [vmem:[#allocation2 + $0x3c8] sm:$0xff]
        %v1060 = vld [vmem:[#allocation2 + $0x3d0] sm:$0xff]
        %v1061 = vld [vmem:[#allocation2 + $0x3d8] sm:$0xff]
        %v1062 = vld [vmem:[#allocation2 + $0x3e0] sm:$0xff]
        %v1063 = vld [vmem:[#allocation2 + $0x3e8] sm:$0xff]
        %v1064 = vld [vmem:[#allocation2 + $0x3f0] sm:$0xff]
        %v1065 = vld [vmem:[#allocation2 + $0x3f8] sm:$0xff]
        %v1066 = vld [vmem:[#allocation2 + $0x400] sm:$0xff]
        %v1067 = vld [vmem:[#allocation2 + $0x408] sm:$0xff]
        %v1068 = vld [vmem:[#allocation2 + $0x410] sm:$0xff]
        %v1069 = vld [vmem:[#allocation2 + $0x418] sm:$0xff]
        %v1070 = vld [vmem:[#allocation2 + $0x420] sm:$0xff]
        %v1071 = vld [vmem:[#allocation2 + $0x428] sm:$0xff]
        %v1072 = vld [vmem:[#allocation2 + $0x430] sm:$0xff]
        %v1073 = vld [vmem:[#allocation2 + $0x438] sm:$0xff]
        %v1074 = vld [vmem:[#allocation2 + $0x440] sm:$0xff]
        %v1075 = vld [vmem:[#allocation2 + $0x448] sm:$0xff]
        %v1076 = vld [vmem:[#allocation2 + $0x450] sm:$0xff]
        %v1077 = vld [vmem:[#allocation2 + $0x458] sm:$0xff]
        %v1078 = vld [vmem:[#allocation2 + $0x460] sm:$0xff]
        %v1079 = vld [vmem:[#allocation2 + $0x468] sm:$0xff]
        %v1080 = vld [vmem:[#allocation2 + $0x470] sm:$0xff]
        %v1081 = vld [vmem:[#allocation2 + $0x478] sm:$0xff]
        %v1082 = vld [vmem:[#allocation2 + $0x480] sm:$0xff]
        %v1083 = vld [vmem:[#allocation2 + $0x488] sm:$0xff]
        %v1084 = vld [vmem:[#allocation2 + $0x490] sm:$0xff]
        %v1085 = vld [vmem:[#allocation2 + $0x498] sm:$0xff]
        %v1086 = vld [vmem:[#allocation2 + $0x4a0] sm:$0xff]
        %v1087 = vld [vmem:[#allocation2 + $0x4a8] sm:$0xff]
        %v1088 = vld [vmem:[#allocation2 + $0x4b0] sm:$0xff]
        %v1089 = vld [vmem:[#allocation2 + $0x4b8] sm:$0xff]
        %v1090 = vld [vmem:[#allocation2 + $0x4c0] sm:$0xff]
        %v1091 = vld [vmem:[#allocation2 + $0x4c8] sm:$0xff]
        %v1092 = vld [vmem:[#allocation2 + $0x4d0] sm:$0xff]
        %v1093 = vld [vmem:[#allocation2 + $0x4d8] sm:$0xff]
        %v1094 = vld [vmem:[#allocation2 + $0x4e0] sm:$0xff]
        %v1095 = vld [vmem:[#allocation2 + $0x4e8] sm:$0xff]
        %v1096 = vld [vmem:[#allocation2 + $0x4f0] sm:$0xff]
        %v1097 = vld [vmem:[#allocation2 + $0x4f8] sm:$0xff]
        %v1098 = vld [vmem:[#allocation2 + $0x500] sm:$0xff]
        %v1099 = vld [vmem:[#allocation2 + $0x508] sm:$0xff]
        %v1100 = vld [vmem:[#allocation2 + $0x510] sm:$0xff]
        %v1101 = vld [vmem:[#allocation2 + $0x518] sm:$0xff]
        %v1102 = vld [vmem:[#allocation2 + $0x520] sm:$0xff]
        %v1103 = vld [vmem:[#allocation2 + $0x528] sm:$0xff]
        %v1104 = vld [vmem:[#allocation2 + $0x530] sm:$0xff]
        %v1105 = vld [vmem:[#allocation2 + $0x538] sm:$0xff]
        %v1106 = vld [vmem:[#allocation2 + $0x540] sm:$0xff]
        %v1107 = vld [vmem:[#allocation2 + $0x548] sm:$0xff]
        %v1108 = vld [vmem:[#allocation2 + $0x550] sm:$0xff]
        %v1109 = vld [vmem:[#allocation2 + $0x558] sm:$0xff]
        %v1110 = vld [vmem:[#allocation2 + $0x560] sm:$0xff]
        %v1111 = vld [vmem:[#allocation2 + $0x568] sm:$0xff]
        %v1112 = vld [vmem:[#allocation2 + $0x570] sm:$0xff]
        %v1113 = vld [vmem:[#allocation2 + $0x578] sm:$0xff]
        %v1114 = vld [vmem:[#allocation2 + $0x580] sm:$0xff]
        %v1115 = vld [vmem:[#allocation2 + $0x588] sm:$0xff]
        %v1116 = vld [vmem:[#allocation2 + $0x590] sm:$0xff]
        %v1117 = vld [vmem:[#allocation2 + $0x598] sm:$0xff]
        %v1118 = vld [vmem:[#allocation2 + $0x5a0] sm:$0xff]
        %v1119 = vld [vmem:[#allocation2 + $0x5a8] sm:$0xff]
        %v1120 = vld [vmem:[#allocation2 + $0x5b0] sm:$0xff]
        %v1121 = vld [vmem:[#allocation2 + $0x5b8] sm:$0xff]
        %v1122 = vld [vmem:[#allocation2 + $0x5c0] sm:$0xff]
        %v1123 = vld [vmem:[#allocation2 + $0x5c8] sm:$0xff]
        %v1124 = vld [vmem:[#allocation2 + $0x5d0] sm:$0xff]
        %v1125 = vld [vmem:[#allocation2 + $0x5d8] sm:$0xff]
        %v1126 = vld [vmem:[#allocation2 + $0x5e0] sm:$0xff]
        %v1127 = vld [vmem:[#allocation2 + $0x5e8] sm:$0xff]
        %v1128 = vld [vmem:[#allocation2 + $0x5f0] sm:$0xff]
        %v1129 = vld [vmem:[#allocation2 + $0x5f8] sm:$0xff]
        %v1130 = vld [vmem:[#allocation2 + $0x600] sm:$0xff]
        %v1131 = vld [vmem:[#allocation2 + $0x608] sm:$0xff]
        %v1132 = vld [vmem:[#allocation2 + $0x610] sm:$0xff]
        %v1133 = vld [vmem:[#allocation2 + $0x618] sm:$0xff]
        %v1134 = vld [vmem:[#allocation2 + $0x620] sm:$0xff]
        %v1135 = vld [vmem:[#allocation2 + $0x628] sm:$0xff]
        %v1136 = vld [vmem:[#allocation2 + $0x630] sm:$0xff]
        %v1137 = vld [vmem:[#allocation2 + $0x638] sm:$0xff]
        %v1138 = vld [vmem:[#allocation2 + $0x640] sm:$0xff]
        %v1139 = vld [vmem:[#allocation2 + $0x648] sm:$0xff]
        %v1140 = vld [vmem:[#allocation2 + $0x650] sm:$0xff]
        %v1141 = vld [vmem:[#allocation2 + $0x658] sm:$0xff]
        %v1142 = vld [vmem:[#allocation2 + $0x660] sm:$0xff]
        %v1143 = vld [vmem:[#allocation2 + $0x668] sm:$0xff]
        %v1144 = vld [vmem:[#allocation2 + $0x670] sm:$0xff]
        %v1145 = vld [vmem:[#allocation2 + $0x678] sm:$0xff]
        %v1146 = vld [vmem:[#allocation2 + $0x680] sm:$0xff]
        %v1147 = vld [vmem:[#allocation2 + $0x688] sm:$0xff]
        %v1148 = vld [vmem:[#allocation2 + $0x690] sm:$0xff]
        %v1149 = vld [vmem:[#allocation2 + $0x698] sm:$0xff]
        %v1150 = vld [vmem:[#allocation2 + $0x6a0] sm:$0xff]
        %v1151 = vld [vmem:[#allocation2 + $0x6a8] sm:$0xff]
        %v1152 = vld [vmem:[#allocation2 + $0x6b0] sm:$0xff]
        %v1153 = vld [vmem:[#allocation2 + $0x6b8] sm:$0xff]
        %v1154 = vld [vmem:[#allocation2 + $0x6c0] sm:$0xff]
        %v1155 = vld [vmem:[#allocation2 + $0x6c8] sm:$0xff]
        %v1156 = vld [vmem:[#allocation2 + $0x6d0] sm:$0xff]
        %v1157 = vld [vmem:[#allocation2 + $0x6d8] sm:$0xff]
        %v1158 = vld [vmem:[#allocation2 + $0x6e0] sm:$0xff]
        %v1159 = vld [vmem:[#allocation2 + $0x6e8] sm:$0xff]
        %v1160 = vld [vmem:[#allocation2 + $0x6f0] sm:$0xff]
        %v1161 = vld [vmem:[#allocation2 + $0x6f8] sm:$0xff]
        %v1162 = vld [vmem:[#allocation2 + $0x700] sm:$0xff]
        %v1163 = vld [vmem:[#allocation2 + $0x708] sm:$0xff]
        %v1164 = vld [vmem:[#allocation2 + $0x710] sm:$0xff]
        %v1165 = vld [vmem:[#allocation2 + $0x718] sm:$0xff]
        %v1166 = vld [vmem:[#allocation2 + $0x720] sm:$0xff]
        %v1167 = vld [vmem:[#allocation2 + $0x728] sm:$0xff]
        %v1168 = vld [vmem:[#allocation2 + $0x730] sm:$0xff]
        %v1169 = vld [vmem:[#allocation2 + $0x738] sm:$0xff]
        %v1170 = vld [vmem:[#allocation2 + $0x740] sm:$0xff]
        %v1171 = vld [vmem:[#allocation2 + $0x748] sm:$0xff]
        %v1172 = vld [vmem:[#allocation2 + $0x750] sm:$0xff]
        %v1173 = vld [vmem:[#allocation2 + $0x758] sm:$0xff]
        %v1174 = vld [vmem:[#allocation2 + $0x760] sm:$0xff]
        %v1175 = vld [vmem:[#allocation2 + $0x768] sm:$0xff]
        %v1176 = vld [vmem:[#allocation2 + $0x770] sm:$0xff]
        %v1177 = vld [vmem:[#allocation2 + $0x778] sm:$0xff]
        %v1178 = vld [vmem:[#allocation2 + $0x780] sm:$0xff]
        %v1179 = vld [vmem:[#allocation2 + $0x788] sm:$0xff]
        %v1180 = vld [vmem:[#allocation2 + $0x790] sm:$0xff]
        %v1181 = vld [vmem:[#allocation2 + $0x798] sm:$0xff]
        %v1182 = vld [vmem:[#allocation2 + $0x7a0] sm:$0xff]
        %v1183 = vld [vmem:[#allocation2 + $0x7a8] sm:$0xff]
        %v1184 = vld [vmem:[#allocation2 + $0x7b0] sm:$0xff]
        %v1185 = vld [vmem:[#allocation2 + $0x7b8] sm:$0xff]
        %v1186 = vld [vmem:[#allocation2 + $0x7c0] sm:$0xff]
        %v1187 = vld [vmem:[#allocation2 + $0x7c8] sm:$0xff]
        %v1188 = vld [vmem:[#allocation2 + $0x7d0] sm:$0xff]
        %v1189 = vld [vmem:[#allocation2 + $0x7d8] sm:$0xff]
        %v1190 = vld [vmem:[#allocation2 + $0x7e0] sm:$0xff]
        %v1191 = vld [vmem:[#allocation2 + $0x7e8] sm:$0xff]
        %v1192 = vld [vmem:[#allocation2 + $0x7f0] sm:$0xff]
        %v1193 = vld [vmem:[#allocation2 + $0x7f8] sm:$0xff]
        %v1194 = vld [vmem:[%s9] sm:$0xf]
        %v1196 = vperm.slane %v1194, 0
        %v1197 = vperm.slane %v1194, 1
        %v1198 = vperm.slane %v1194, 2
        %v1199 = vperm.slane %v1194, 3
        %1204 = vmatpush.msra.mxu0 %v998
        %1205 = vmatpush.msra.mxu0 %v994
        %1206 = vmatpush.msra.mxu0 %v990
        %1207 = vmatpush.msra.mxu0 %v986
        %1208 = vmatpush.msra.mxu0 %v982
        %1209 = vmatpush.msra.mxu0 %v978
        %1210 = vmatpush.msra.mxu0 %v974
        %1211 = vmatpush.msra.mxu0 %v970
        %1212 = vmatpush.msra.mxu0 %v966
        %1213 = vmatpush.msra.mxu0 %v962
        %1214 = vmatpush.msra.mxu0 %v958
        %1215 = vmatpush.msra.mxu0 %v954
        %1216 = vmatpush.msra.mxu0 %v950
        %1217 = vmatpush.msra.mxu0 %v946
        %1218 = vmatpush.msra.mxu0 %v942
        %1219 = vmatpush.msra.mxu0 %v938
        %1220 = vmatmul.f32.gmra.mxu0 %v934
        %v1221 = vpop.f32.mrf.mxu0
        %v1222 = vadd.f32 %v1196, %v1221
        %1223 = vdwg.mxu0
        %1224 = vmatpush.msra.mxu0 %v1062
        %1225 = vmatpush.msra.mxu0 %v1058
        %1226 = vmatpush.msra.mxu0 %v1054
        %1227 = vmatpush.msra.mxu0 %v1050
        %1228 = vmatpush.msra.mxu0 %v1046
        %1229 = vmatpush.msra.mxu0 %v1042
        %1230 = vmatpush.msra.mxu0 %v1038
        %1231 = vmatpush.msra.mxu0 %v1034
        %1232 = vmatpush.msra.mxu0 %v1030
        %1233 = vmatpush.msra.mxu0 %v1026
        %1234 = vmatpush.msra.mxu0 %v1022
        %1235 = vmatpush.msra.mxu0 %v1018
        %1236 = vmatpush.msra.mxu0 %v1014
        %1237 = vmatpush.msra.mxu0 %v1010
        %1238 = vmatpush.msra.mxu0 %v1006
        %1239 = vmatpush.msra.mxu0 %v1002
        %1240 = vmatmul.f32.gmra.mxu0 %v935
        %v1241 = vpop.f32.mrf.mxu0
        %v1242 = vadd.f32 %v1222, %v1241
        %1243 = vdwg.mxu0
        %1244 = vmatpush.msra.mxu0 %v1126
        %1245 = vmatpush.msra.mxu0 %v1122
        %1246 = vmatpush.msra.mxu0 %v1118
        %1247 = vmatpush.msra.mxu0 %v1114
        %1248 = vmatpush.msra.mxu0 %v1110
        %1249 = vmatpush.msra.mxu0 %v1106
        %1250 = vmatpush.msra.mxu0 %v1102
        %1251 = vmatpush.msra.mxu0 %v1098
        %1252 = vmatpush.msra.mxu0 %v1094
        %1253 = vmatpush.msra.mxu0 %v1090
        %1254 = vmatpush.msra.mxu0 %v1086
        %1255 = vmatpush.msra.mxu0 %v1082
        %1256 = vmatpush.msra.mxu0 %v1078
        %1257 = vmatpush.msra.mxu0 %v1074
        %1258 = vmatpush.msra.mxu0 %v1070
        %1259 = vmatpush.msra.mxu0 %v1066
        %1260 = vmatmul.f32.gmra.mxu0 %v936
        %v1261 = vpop.f32.mrf.mxu0
        %v1262 = vadd.f32 %v1242, %v1261
        %1263 = vdwg.mxu0
        %1264 = vmatpush.msra.mxu0 %v1190
        %1265 = vmatpush.msra.mxu0 %v1186
        %1266 = vmatpush.msra.mxu0 %v1182
        %1267 = vmatpush.msra.mxu0 %v1178
        %1268 = vmatpush.msra.mxu0 %v1174
        %1269 = vmatpush.msra.mxu0 %v1170
        %1270 = vmatpush.msra.mxu0 %v1166
        %1271 = vmatpush.msra.mxu0 %v1162
        %1272 = vmatpush.msra.mxu0 %v1158
        %1273 = vmatpush.msra.mxu0 %v1154
        %1274 = vmatpush.msra.mxu0 %v1150
        %1275 = vmatpush.msra.mxu0 %v1146
        %1276 = vmatpush.msra.mxu0 %v1142
        %1277 = vmatpush.msra.mxu0 %v1138
        %1278 = vmatpush.msra.mxu0 %v1134
        %1279 = vmatpush.msra.mxu0 %v1130
        %1280 = vmatmul.f32.gmra.mxu0 %v937
        %v1281 = vpop.f32.mrf.mxu0
        %v1282 = vadd.f32 %v1262, %v1281
        %1283 = vdwg.mxu0
        %1284 = vmatpush.msra.mxu0 %v999
        %1285 = vmatpush.msra.mxu0 %v995
        %1286 = vmatpush.msra.mxu0 %v991
        %1287 = vmatpush.msra.mxu0 %v987
        %1288 = vmatpush.msra.mxu0 %v983
        %1289 = vmatpush.msra.mxu0 %v979
        %1290 = vmatpush.msra.mxu0 %v975
        %1291 = vmatpush.msra.mxu0 %v971
        %1292 = vmatpush.msra.mxu0 %v967
        %1293 = vmatpush.msra.mxu0 %v963
        %1294 = vmatpush.msra.mxu0 %v959
        %1295 = vmatpush.msra.mxu0 %v955
        %1296 = vmatpush.msra.mxu0 %v951
        %1297 = vmatpush.msra.mxu0 %v947
        %1298 = vmatpush.msra.mxu0 %v943
        %1299 = vmatpush.msra.mxu0 %v939
        %1300 = vmatmul.f32.gmra.mxu0 %v934
        %v1301 = vpop.f32.mrf.mxu0
        %v1302 = vadd.f32 %v1197, %v1301
        %1303 = vdwg.mxu0
        %1304 = vmatpush.msra.mxu0 %v1063
        %1305 = vmatpush.msra.mxu0 %v1059
        %1306 = vmatpush.msra.mxu0 %v1055
        %1307 = vmatpush.msra.mxu0 %v1051
        %1308 = vmatpush.msra.mxu0 %v1047
        %1309 = vmatpush.msra.mxu0 %v1043
        %1310 = vmatpush.msra.mxu0 %v1039
        %1311 = vmatpush.msra.mxu0 %v1035
        %1312 = vmatpush.msra.mxu0 %v1031
        %1313 = vmatpush.msra.mxu0 %v1027
        %1314 = vmatpush.msra.mxu0 %v1023
        %1315 = vmatpush.msra.mxu0 %v1019
        %1316 = vmatpush.msra.mxu0 %v1015
        %1317 = vmatpush.msra.mxu0 %v1011
        %1318 = vmatpush.msra.mxu0 %v1007
        %1319 = vmatpush.msra.mxu0 %v1003
        %1320 = vmatmul.f32.gmra.mxu0 %v935
        %v1321 = vpop.f32.mrf.mxu0
        %v1322 = vadd.f32 %v1302, %v1321
        %1323 = vdwg.mxu0
        %1324 = vmatpush.msra.mxu0 %v1127
        %1325 = vmatpush.msra.mxu0 %v1123
        %1326 = vmatpush.msra.mxu0 %v1119
        %1327 = vmatpush.msra.mxu0 %v1115
        %1328 = vmatpush.msra.mxu0 %v1111
        %1329 = vmatpush.msra.mxu0 %v1107
        %1330 = vmatpush.msra.mxu0 %v1103
        %1331 = vmatpush.msra.mxu0 %v1099
        %1332 = vmatpush.msra.mxu0 %v1095
        %1333 = vmatpush.msra.mxu0 %v1091
        %1334 = vmatpush.msra.mxu0 %v1087
        %1335 = vmatpush.msra.mxu0 %v1083
        %1336 = vmatpush.msra.mxu0 %v1079
        %1337 = vmatpush.msra.mxu0 %v1075
        %1338 = vmatpush.msra.mxu0 %v1071
        %1339 = vmatpush.msra.mxu0 %v1067
        %1340 = vmatmul.f32.gmra.mxu0 %v936
        %v1341 = vpop.f32.mrf.mxu0
        %v1342 = vadd.f32 %v1322, %v1341
        %1343 = vdwg.mxu0
        %1344 = vmatpush.msra.mxu0 %v1191
        %1345 = vmatpush.msra.mxu0 %v1187
        %1346 = vmatpush.msra.mxu0 %v1183
        %1347 = vmatpush.msra.mxu0 %v1179
        %1348 = vmatpush.msra.mxu0 %v1175
        %1349 = vmatpush.msra.mxu0 %v1171
        %1350 = vmatpush.msra.mxu0 %v1167
        %1351 = vmatpush.msra.mxu0 %v1163
        %1352 = vmatpush.msra.mxu0 %v1159
        %1353 = vmatpush.msra.mxu0 %v1155
        %1354 = vmatpush.msra.mxu0 %v1151
        %1355 = vmatpush.msra.mxu0 %v1147
        %1356 = vmatpush.msra.mxu0 %v1143
        %1357 = vmatpush.msra.mxu0 %v1139
        %1358 = vmatpush.msra.mxu0 %v1135
        %1359 = vmatpush.msra.mxu0 %v1131
        %1360 = vmatmul.f32.gmra.mxu0 %v937
        %v1361 = vpop.f32.mrf.mxu0
        %v1362 = vadd.f32 %v1342, %v1361
        %1363 = vdwg.mxu0
        %1364 = vmatpush.msra.mxu0 %v1000
        %1365 = vmatpush.msra.mxu0 %v996
        %1366 = vmatpush.msra.mxu0 %v992
        %1367 = vmatpush.msra.mxu0 %v988
        %1368 = vmatpush.msra.mxu0 %v984
        %1369 = vmatpush.msra.mxu0 %v980
        %1370 = vmatpush.msra.mxu0 %v976
        %1371 = vmatpush.msra.mxu0 %v972
        %1372 = vmatpush.msra.mxu0 %v968
        %1373 = vmatpush.msra.mxu0 %v964
        %1374 = vmatpush.msra.mxu0 %v960
        %1375 = vmatpush.msra.mxu0 %v956
        %1376 = vmatpush.msra.mxu0 %v952
        %1377 = vmatpush.msra.mxu0 %v948
        %1378 = vmatpush.msra.mxu0 %v944
        %1379 = vmatpush.msra.mxu0 %v940
        %1380 = vmatmul.f32.gmra.mxu0 %v934
        %v1381 = vpop.f32.mrf.mxu0
        %v1382 = vadd.f32 %v1198, %v1381
        %1383 = vdwg.mxu0
        %1384 = vmatpush.msra.mxu0 %v1064
        %1385 = vmatpush.msra.mxu0 %v1060
        %1386 = vmatpush.msra.mxu0 %v1056
        %1387 = vmatpush.msra.mxu0 %v1052
        %1388 = vmatpush.msra.mxu0 %v1048
        %1389 = vmatpush.msra.mxu0 %v1044
        %1390 = vmatpush.msra.mxu0 %v1040
        %1391 = vmatpush.msra.mxu0 %v1036
        %1392 = vmatpush.msra.mxu0 %v1032
        %1393 = vmatpush.msra.mxu0 %v1028
        %1394 = vmatpush.msra.mxu0 %v1024
        %1395 = vmatpush.msra.mxu0 %v1020
        %1396 = vmatpush.msra.mxu0 %v1016
        %1397 = vmatpush.msra.mxu0 %v1012
        %1398 = vmatpush.msra.mxu0 %v1008
        %1399 = vmatpush.msra.mxu0 %v1004
        %1400 = vmatmul.f32.gmra.mxu0 %v935
        %v1401 = vpop.f32.mrf.mxu0
        %v1402 = vadd.f32 %v1382, %v1401
        %1403 = vdwg.mxu0
        %1404 = vmatpush.msra.mxu0 %v1128
        %1405 = vmatpush.msra.mxu0 %v1124
        %1406 = vmatpush.msra.mxu0 %v1120
        %1407 = vmatpush.msra.mxu0 %v1116
        %1408 = vmatpush.msra.mxu0 %v1112
        %1409 = vmatpush.msra.mxu0 %v1108
        %1410 = vmatpush.msra.mxu0 %v1104
        %1411 = vmatpush.msra.mxu0 %v1100
        %1412 = vmatpush.msra.mxu0 %v1096
        %1413 = vmatpush.msra.mxu0 %v1092
        %1414 = vmatpush.msra.mxu0 %v1088
        %1415 = vmatpush.msra.mxu0 %v1084
        %1416 = vmatpush.msra.mxu0 %v1080
        %1417 = vmatpush.msra.mxu0 %v1076
        %1418 = vmatpush.msra.mxu0 %v1072
        %1419 = vmatpush.msra.mxu0 %v1068
        %1420 = vmatmul.f32.gmra.mxu0 %v936
        %v1421 = vpop.f32.mrf.mxu0
        %v1422 = vadd.f32 %v1402, %v1421
        %1423 = vdwg.mxu0
        %1424 = vmatpush.msra.mxu0 %v1192
        %1425 = vmatpush.msra.mxu0 %v1188
        %1426 = vmatpush.msra.mxu0 %v1184
        %1427 = vmatpush.msra.mxu0 %v1180
        %1428 = vmatpush.msra.mxu0 %v1176
        %1429 = vmatpush.msra.mxu0 %v1172
        %1430 = vmatpush.msra.mxu0 %v1168
        %1431 = vmatpush.msra.mxu0 %v1164
        %1432 = vmatpush.msra.mxu0 %v1160
        %1433 = vmatpush.msra.mxu0 %v1156
        %1434 = vmatpush.msra.mxu0 %v1152
        %1435 = vmatpush.msra.mxu0 %v1148
        %1436 = vmatpush.msra.mxu0 %v1144
        %1437 = vmatpush.msra.mxu0 %v1140
        %1438 = vmatpush.msra.mxu0 %v1136
        %1439 = vmatpush.msra.mxu0 %v1132
        %1440 = vmatmul.f32.gmra.mxu0 %v937
        %v1441 = vpop.f32.mrf.mxu0
        %v1442 = vadd.f32 %v1422, %v1441
        %1443 = vdwg.mxu0
        %1444 = vmatpush.msra.mxu0 %v1001
        %1445 = vmatpush.msra.mxu0 %v997
        %1446 = vmatpush.msra.mxu0 %v993
        %1447 = vmatpush.msra.mxu0 %v989
        %1448 = vmatpush.msra.mxu0 %v985
        %1449 = vmatpush.msra.mxu0 %v981
        %1450 = vmatpush.msra.mxu0 %v977
        %1451 = vmatpush.msra.mxu0 %v973
        %1452 = vmatpush.msra.mxu0 %v969
        %1453 = vmatpush.msra.mxu0 %v965
        %1454 = vmatpush.msra.mxu0 %v961
        %1455 = vmatpush.msra.mxu0 %v957
        %1456 = vmatpush.msra.mxu0 %v953
        %1457 = vmatpush.msra.mxu0 %v949
        %1458 = vmatpush.msra.mxu0 %v945
        %1459 = vmatpush.msra.mxu0 %v941
        %1460 = vmatmul.f32.gmra.mxu0 %v934
        %v1461 = vpop.f32.mrf.mxu0
        %v1462 = vadd.f32 %v1199, %v1461
        %1463 = vdwg.mxu0
        %1464 = vmatpush.msra.mxu0 %v1065
        %1465 = vmatpush.msra.mxu0 %v1061
        %1466 = vmatpush.msra.mxu0 %v1057
        %1467 = vmatpush.msra.mxu0 %v1053
        %1468 = vmatpush.msra.mxu0 %v1049
        %1469 = vmatpush.msra.mxu0 %v1045
        %1470 = vmatpush.msra.mxu0 %v1041
        %1471 = vmatpush.msra.mxu0 %v1037
        %1472 = vmatpush.msra.mxu0 %v1033
        %1473 = vmatpush.msra.mxu0 %v1029
        %1474 = vmatpush.msra.mxu0 %v1025
        %1475 = vmatpush.msra.mxu0 %v1021
        %1476 = vmatpush.msra.mxu0 %v1017
        %1477 = vmatpush.msra.mxu0 %v1013
        %1478 = vmatpush.msra.mxu0 %v1009
        %1479 = vmatpush.msra.mxu0 %v1005
        %1480 = vmatmul.f32.gmra.mxu0 %v935
        %v1481 = vpop.f32.mrf.mxu0
        %v1482 = vadd.f32 %v1462, %v1481
        %1483 = vdwg.mxu0
        %1484 = vmatpush.msra.mxu0 %v1129
        %1485 = vmatpush.msra.mxu0 %v1125
        %1486 = vmatpush.msra.mxu0 %v1121
        %1487 = vmatpush.msra.mxu0 %v1117
        %1488 = vmatpush.msra.mxu0 %v1113
        %1489 = vmatpush.msra.mxu0 %v1109
        %1490 = vmatpush.msra.mxu0 %v1105
        %1491 = vmatpush.msra.mxu0 %v1101
        %1492 = vmatpush.msra.mxu0 %v1097
        %1493 = vmatpush.msra.mxu0 %v1093
        %1494 = vmatpush.msra.mxu0 %v1089
        %1495 = vmatpush.msra.mxu0 %v1085
        %1496 = vmatpush.msra.mxu0 %v1081
        %1497 = vmatpush.msra.mxu0 %v1077
        %1498 = vmatpush.msra.mxu0 %v1073
        %1499 = vmatpush.msra.mxu0 %v1069
        %1500 = vmatmul.f32.gmra.mxu0 %v936
        %v1501 = vpop.f32.mrf.mxu0
        %v1502 = vadd.f32 %v1482, %v1501
        %1503 = vdwg.mxu0
        %1504 = vmatpush.msra.mxu0 %v1193
        %1505 = vmatpush.msra.mxu0 %v1189
        %1506 = vmatpush.msra.mxu0 %v1185
        %1507 = vmatpush.msra.mxu0 %v1181
        %1508 = vmatpush.msra.mxu0 %v1177
        %1509 = vmatpush.msra.mxu0 %v1173
        %1510 = vmatpush.msra.mxu0 %v1169
        %1511 = vmatpush.msra.mxu0 %v1165
        %1512 = vmatpush.msra.mxu0 %v1161
        %1513 = vmatpush.msra.mxu0 %v1157
        %1514 = vmatpush.msra.mxu0 %v1153
        %1515 = vmatpush.msra.mxu0 %v1149
        %1516 = vmatpush.msra.mxu0 %v1145
        %1517 = vmatpush.msra.mxu0 %v1141
        %1518 = vmatpush.msra.mxu0 %v1137
        %1519 = vmatpush.msra.mxu0 %v1133
        %1520 = vmatmul.f32.gmra.mxu0 %v937
        %v1521 = vpop.f32.mrf.mxu0
        %v1522 = vadd.f32 %v1502, %v1521
        %1523 = vdwg.mxu0
        %v1524 = vld [vmem:[%s10] sm:$0xf]
        %v1525 = vld [vmem:[%s11] sm:$0xf]
        %v1526 = vrot.slane %v1282, 4
        %v1527 = vadd.f32 %v1282, %v1526
        %v1528 = vrot.slane %v1527, 2
        %v1529 = vadd.f32 %v1527, %v1528
        %v1530 = vrot.slane %v1529, 1
        %v1531 = vadd.f32 %v1529, %v1530
        %v1532 = vrot.slane %v1362, 4
        %v1533 = vadd.f32 %v1362, %v1532
        %v1534 = vrot.slane %v1533, 2
        %v1535 = vadd.f32 %v1533, %v1534
        %v1536 = vrot.slane %v1535, 1
        %v1537 = vadd.f32 %v1535, %v1536
        %v1538 = vrot.slane %v1442, 4
        %v1539 = vadd.f32 %v1442, %v1538
        %v1540 = vrot.slane %v1539, 2
        %v1541 = vadd.f32 %v1539, %v1540
        %v1542 = vrot.slane %v1541, 1
        %v1543 = vadd.f32 %v1541, %v1542
        %v1544 = vrot.slane %v1522, 4
        %v1545 = vadd.f32 %v1522, %v1544
        %v1546 = vrot.slane %v1545, 2
        %v1547 = vadd.f32 %v1545, %v1546
        %v1548 = vrot.slane %v1547, 1
        %v1549 = vadd.f32 %v1547, %v1548
        %v1550 = vmul.f32 %v1531, %v807
        %v1551 = vmul.f32 %v1537, %v807
        %v1552 = vmul.f32 %v1543, %v807
        %v1553 = vmul.f32 %v1549, %v807
        %v1554 = vmul.f32 %v1282, %v1282
        %v1555 = vmul.f32 %v1362, %v1362
        %v1556 = vmul.f32 %v1442, %v1442
        %v1557 = vmul.f32 %v1522, %v1522
        %v1558 = vrot.slane %v1554, 4
        %v1559 = vadd.f32 %v1554, %v1558
        %v1560 = vrot.slane %v1559, 2
        %v1561 = vadd.f32 %v1559, %v1560
        %v1562 = vrot.slane %v1561, 1
        %v1563 = vadd.f32 %v1561, %v1562
        %v1564 = vrot.slane %v1555, 4
        %v1565 = vadd.f32 %v1555, %v1564
        %v1566 = vrot.slane %v1565, 2
        %v1567 = vadd.f32 %v1565, %v1566
        %v1568 = vrot.slane %v1567, 1
        %v1569 = vadd.f32 %v1567, %v1568
        %v1570 = vrot.slane %v1556, 4
        %v1571 = vadd.f32 %v1556, %v1570
        %v1572 = vrot.slane %v1571, 2
        %v1573 = vadd.f32 %v1571, %v1572
        %v1574 = vrot.slane %v1573, 1
        %v1575 = vadd.f32 %v1573, %v1574
        %v1576 = vrot.slane %v1557, 4
        %v1577 = vadd.f32 %v1557, %v1576
        %v1578 = vrot.slane %v1577, 2
        %v1579 = vadd.f32 %v1577, %v1578
        %v1580 = vrot.slane %v1579, 1
        %v1581 = vadd.f32 %v1579, %v1580
        %v1582 = vmul.f32 %v1563, %v807
        %v1583 = vmul.f32 %v1569, %v807
        %v1584 = vmul.f32 %v1575, %v807
        %v1585 = vmul.f32 %v1581, %v807
        %v1586 = vmul.f32 %v1550, %v1550
        %v1587 = vmul.f32 %v1551, %v1551
        %v1588 = vmul.f32 %v1552, %v1552
        %v1589 = vmul.f32 %v1553, %v1553
        %v1590 = vsub.f32 %v1582, %v1586
        %v1591 = vsub.f32 %v1583, %v1587
        %v1592 = vsub.f32 %v1584, %v1588
        %v1593 = vsub.f32 %v1585, %v1589
        %v1594 = vmax.f32 %v1590, 0.0
        %v1595 = vmax.f32 %v1591, 0.0
        %v1596 = vmax.f32 %v1592, 0.0
        %v1597 = vmax.f32 %v1593, 0.0
        %v1598 = vsub.f32 %v1282, %v1550
        %v1599 = vsub.f32 %v1362, %v1551
        %v1600 = vsub.f32 %v1442, %v1552
        %v1601 = vsub.f32 %v1522, %v1553
        %v1602 = vadd.f32 %v1594, 1e-05
        %v1603 = vadd.f32 %v1595, 1e-05
        %v1604 = vadd.f32 %v1596, 1e-05
        %v1605 = vadd.f32 %v1597, 1e-05
        %v1606 = vrsqrt.pop %v1602
        %v1607 = vmul.f32 %v1606, %v1602
        %v1608 = vmul.f32 %v1607, %v1606
        %v1609 = vmul.f32 0.5, %v1608
        %v1610 = vsub.f32 1.5, %v1609
        %v1611 = vmul.f32 %v1606, %v1610
        %vm1612 = vweird.f32 %v1602
        %vm1613 = vweird.f32 %v1606
        %vm1614 = vmor %vm1612, %vm1613
        %v1615 = vsel %vm1614, %v1606, %v1611
        %v1616 = vrsqrt.pop %v1603
        %v1617 = vmul.f32 %v1616, %v1603
        %v1618 = vmul.f32 %v1617, %v1616
        %v1619 = vmul.f32 0.5, %v1618
        %v1620 = vsub.f32 1.5, %v1619
        %v1621 = vmul.f32 %v1616, %v1620
        %vm1622 = vweird.f32 %v1603
        %vm1623 = vweird.f32 %v1616
        %vm1624 = vmor %vm1622, %vm1623
        %v1625 = vsel %vm1624, %v1616, %v1621
        %v1626 = vrsqrt.pop %v1604
        %v1627 = vmul.f32 %v1626, %v1604
        %v1628 = vmul.f32 %v1627, %v1626
        %v1629 = vmul.f32 0.5, %v1628
        %v1630 = vsub.f32 1.5, %v1629
        %v1631 = vmul.f32 %v1626, %v1630
        %vm1632 = vweird.f32 %v1604
        %vm1633 = vweird.f32 %v1626
        %vm1634 = vmor %vm1632, %vm1633
        %v1635 = vsel %vm1634, %v1626, %v1631
        %v1636 = vrsqrt.pop %v1605
        %v1637 = vmul.f32 %v1636, %v1605
        %v1638 = vmul.f32 %v1637, %v1636
        %v1639 = vmul.f32 0.5, %v1638
        %v1640 = vsub.f32 1.5, %v1639
        %v1641 = vmul.f32 %v1636, %v1640
        %vm1642 = vweird.f32 %v1605
        %vm1643 = vweird.f32 %v1636
        %vm1644 = vmor %vm1642, %vm1643
        %v1645 = vsel %vm1644, %v1636, %v1641
        %v1646 = vmul.f32 %v1598, %v1615
        %v1647 = vmul.f32 %v1599, %v1625
        %v1648 = vmul.f32 %v1600, %v1635
        %v1649 = vmul.f32 %v1601, %v1645
        %v1651 = vperm.slane %v1524, 0
        %v1652 = vperm.slane %v1524, 1
        %v1653 = vperm.slane %v1524, 2
        %v1654 = vperm.slane %v1524, 3
        %v1659 = vmul.f32 %v1646, %v1651
        %v1660 = vmul.f32 %v1647, %v1652
        %v1661 = vmul.f32 %v1648, %v1653
        %v1662 = vmul.f32 %v1649, %v1654
        %v1664 = vperm.slane %v1525, 0
        %v1665 = vperm.slane %v1525, 1
        %v1666 = vperm.slane %v1525, 2
        %v1667 = vperm.slane %v1525, 3
        %v1672 = vadd.f32 %v1659, %v1664
        %v1673 = vadd.f32 %v1660, %v1665
        %v1674 = vadd.f32 %v1661, %v1666
        %v1675 = vadd.f32 %v1662, %v1667
        %v1676 = vmax.f32 %v1672, 0.0
        %v1677 = vmax.f32 %v1673, 0.0
        %v1678 = vmax.f32 %v1674, 0.0
        %v1679 = vmax.f32 %v1675, 0.0
        %v1680 = vld [vmem:[%s12] sm:$0xff]
        %v1681 = vld [vmem:[%s12 + $0x8] sm:$0xff]
        %v1682 = vld [vmem:[%s12 + $0x10] sm:$0xff]
        %v1683 = vld [vmem:[%s12 + $0x18] sm:$0xff]
        %v1684 = vld [vmem:[%s12 + $0x20] sm:$0xff]
        %v1685 = vld [vmem:[%s12 + $0x28] sm:$0xff]
        %v1686 = vld [vmem:[%s12 + $0x30] sm:$0xff]
        %v1687 = vld [vmem:[%s12 + $0x38] sm:$0xff]
        %v1688 = vld [vmem:[%s12 + $0x40] sm:$0xff]
        %v1689 = vld [vmem:[%s12 + $0x48] sm:$0xff]
        %v1690 = vld [vmem:[%s12 + $0x50] sm:$0xff]
        %v1691 = vld [vmem:[%s12 + $0x58] sm:$0xff]
        %v1692 = vld [vmem:[%s12 + $0x60] sm:$0xff]
        %v1693 = vld [vmem:[%s12 + $0x68] sm:$0xff]
        %v1694 = vld [vmem:[%s12 + $0x70] sm:$0xff]
        %v1695 = vld [vmem:[%s12 + $0x78] sm:$0xff]
        %v1696 = vld [vmem:[%s12 + $0x80] sm:$0xff]
        %v1697 = vld [vmem:[%s12 + $0x88] sm:$0xff]
        %v1698 = vld [vmem:[%s12 + $0x90] sm:$0xff]
        %v1699 = vld [vmem:[%s12 + $0x98] sm:$0xff]
        %v1700 = vld [vmem:[%s12 + $0xa0] sm:$0xff]
        %v1701 = vld [vmem:[%s12 + $0xa8] sm:$0xff]
        %v1702 = vld [vmem:[%s12 + $0xb0] sm:$0xff]
        %v1703 = vld [vmem:[%s12 + $0xb8] sm:$0xff]
        %v1704 = vld [vmem:[%s12 + $0xc0] sm:$0xff]
        %v1705 = vld [vmem:[%s12 + $0xc8] sm:$0xff]
        %v1706 = vld [vmem:[%s12 + $0xd0] sm:$0xff]
        %v1707 = vld [vmem:[%s12 + $0xd8] sm:$0xff]
        %v1708 = vld [vmem:[%s12 + $0xe0] sm:$0xff]
        %v1709 = vld [vmem:[%s12 + $0xe8] sm:$0xff]
        %v1710 = vld [vmem:[%s12 + $0xf0] sm:$0xff]
        %v1711 = vld [vmem:[%s12 + $0xf8] sm:$0xff]
        %v1712 = vld [vmem:[%s12 + $0x100] sm:$0xff]
        %v1713 = vld [vmem:[%s12 + $0x108] sm:$0xff]
        %v1714 = vld [vmem:[%s12 + $0x110] sm:$0xff]
        %v1715 = vld [vmem:[%s12 + $0x118] sm:$0xff]
        %v1716 = vld [vmem:[%s12 + $0x120] sm:$0xff]
        %v1717 = vld [vmem:[%s12 + $0x128] sm:$0xff]
        %v1718 = vld [vmem:[%s12 + $0x130] sm:$0xff]
        %v1719 = vld [vmem:[%s12 + $0x138] sm:$0xff]
        %v1720 = vld [vmem:[%s12 + $0x140] sm:$0xff]
        %v1721 = vld [vmem:[%s12 + $0x148] sm:$0xff]
        %v1722 = vld [vmem:[%s12 + $0x150] sm:$0xff]
        %v1723 = vld [vmem:[%s12 + $0x158] sm:$0xff]
        %v1724 = vld [vmem:[%s12 + $0x160] sm:$0xff]
        %v1725 = vld [vmem:[%s12 + $0x168] sm:$0xff]
        %v1726 = vld [vmem:[%s12 + $0x170] sm:$0xff]
        %v1727 = vld [vmem:[%s12 + $0x178] sm:$0xff]
        %v1728 = vld [vmem:[%s12 + $0x180] sm:$0xff]
        %v1729 = vld [vmem:[%s12 + $0x188] sm:$0xff]
        %v1730 = vld [vmem:[%s12 + $0x190] sm:$0xff]
        %v1731 = vld [vmem:[%s12 + $0x198] sm:$0xff]
        %v1732 = vld [vmem:[%s12 + $0x1a0] sm:$0xff]
        %v1733 = vld [vmem:[%s12 + $0x1a8] sm:$0xff]
        %v1734 = vld [vmem:[%s12 + $0x1b0] sm:$0xff]
        %v1735 = vld [vmem:[%s12 + $0x1b8] sm:$0xff]
        %v1736 = vld [vmem:[%s12 + $0x1c0] sm:$0xff]
        %v1737 = vld [vmem:[%s12 + $0x1c8] sm:$0xff]
        %v1738 = vld [vmem:[%s12 + $0x1d0] sm:$0xff]
        %v1739 = vld [vmem:[%s12 + $0x1d8] sm:$0xff]
        %v1740 = vld [vmem:[%s12 + $0x1e0] sm:$0xff]
        %v1741 = vld [vmem:[%s12 + $0x1e8] sm:$0xff]
        %v1742 = vld [vmem:[%s12 + $0x1f0] sm:$0xff]
        %v1743 = vld [vmem:[%s12 + $0x1f8] sm:$0xff]
        %v1744 = vld [vmem:[%s13] sm:$0x1]
        %v1746 = vperm.slane %v1744, 0
        %1748 = vmatpush.msra.mxu0 %v1695
        %1749 = vmatpush.msra.mxu0 %v1694
        %1750 = vmatpush.msra.mxu0 %v1693
        %1751 = vmatpush.msra.mxu0 %v1692
        %1752 = vmatpush.msra.mxu0 %v1691
        %1753 = vmatpush.msra.mxu0 %v1690
        %1754 = vmatpush.msra.mxu0 %v1689
        %1755 = vmatpush.msra.mxu0 %v1688
        %1756 = vmatpush.msra.mxu0 %v1687
        %1757 = vmatpush.msra.mxu0 %v1686
        %1758 = vmatpush.msra.mxu0 %v1685
        %1759 = vmatpush.msra.mxu0 %v1684
        %1760 = vmatpush.msra.mxu0 %v1683
        %1761 = vmatpush.msra.mxu0 %v1682
        %1762 = vmatpush.msra.mxu0 %v1681
        %1763 = vmatpush.msra.mxu0 %v1680
        %1764 = vmatmul.f32.gmra.mxu0 %v1676
        %v1765 = vpop.f32.mrf.mxu0
        %v1766 = vadd.f32 %v1746, %v1765
        %1767 = vdwg.mxu0
        %1768 = vmatpush.msra.mxu0 %v1711
        %1769 = vmatpush.msra.mxu0 %v1710
        %1770 = vmatpush.msra.mxu0 %v1709
        %1771 = vmatpush.msra.mxu0 %v1708
        %1772 = vmatpush.msra.mxu0 %v1707
        %1773 = vmatpush.msra.mxu0 %v1706
        %1774 = vmatpush.msra.mxu0 %v1705
        %1775 = vmatpush.msra.mxu0 %v1704
        %1776 = vmatpush.msra.mxu0 %v1703
        %1777 = vmatpush.msra.mxu0 %v1702
        %1778 = vmatpush.msra.mxu0 %v1701
        %1779 = vmatpush.msra.mxu0 %v1700
        %1780 = vmatpush.msra.mxu0 %v1699
        %1781 = vmatpush.msra.mxu0 %v1698
        %1782 = vmatpush.msra.mxu0 %v1697
        %1783 = vmatpush.msra.mxu0 %v1696
        %1784 = vmatmul.f32.gmra.mxu0 %v1677
        %v1785 = vpop.f32.mrf.mxu0
        %v1786 = vadd.f32 %v1766, %v1785
        %1787 = vdwg.mxu0
        %1788 = vmatpush.msra.mxu0 %v1727
        %1789 = vmatpush.msra.mxu0 %v1726
        %1790 = vmatpush.msra.mxu0 %v1725
        %1791 = vmatpush.msra.mxu0 %v1724
        %1792 = vmatpush.msra.mxu0 %v1723
        %1793 = vmatpush.msra.mxu0 %v1722
        %1794 = vmatpush.msra.mxu0 %v1721
        %1795 = vmatpush.msra.mxu0 %v1720
        %1796 = vmatpush.msra.mxu0 %v1719
        %1797 = vmatpush.msra.mxu0 %v1718
        %1798 = vmatpush.msra.mxu0 %v1717
        %1799 = vmatpush.msra.mxu0 %v1716
        %1800 = vmatpush.msra.mxu0 %v1715
        %1801 = vmatpush.msra.mxu0 %v1714
        %1802 = vmatpush.msra.mxu0 %v1713
        %1803 = vmatpush.msra.mxu0 %v1712
        %1804 = vmatmul.f32.gmra.mxu0 %v1678
        %v1805 = vpop.f32.mrf.mxu0
        %v1806 = vadd.f32 %v1786, %v1805
        %1807 = vdwg.mxu0
        %1808 = vmatpush.msra.mxu0 %v1743
        %1809 = vmatpush.msra.mxu0 %v1742
        %1810 = vmatpush.msra.mxu0 %v1741
        %1811 = vmatpush.msra.mxu0 %v1740
        %1812 = vmatpush.msra.mxu0 %v1739
        %1813 = vmatpush.msra.mxu0 %v1738
        %1814 = vmatpush.msra.mxu0 %v1737
        %1815 = vmatpush.msra.mxu0 %v1736
        %1816 = vmatpush.msra.mxu0 %v1735
        %1817 = vmatpush.msra.mxu0 %v1734
        %1818 = vmatpush.msra.mxu0 %v1733
        %1819 = vmatpush.msra.mxu0 %v1732
        %1820 = vmatpush.msra.mxu0 %v1731
        %1821 = vmatpush.msra.mxu0 %v1730
        %1822 = vmatpush.msra.mxu0 %v1729
        %1823 = vmatpush.msra.mxu0 %v1728
        %1824 = vmatmul.f32.gmra.mxu0 %v1679
        %v1825 = vpop.f32.mrf.mxu0
        %v1826 = vadd.f32 %v1806, %v1825
        %1827 = vdwg.mxu0
        %v1828 = vsel %vm509, %v1826, -inf
        %1829 = vmax.xlane.f32.xlu0 %v1828
        %v1830 = vpop.xlane.xlu0 %1829
        %v1831 = vsub.f32 %v1826, %v1830
        %v1832 = vmul.f32 %v1831, 1.442695
        %v1833 = vpow.pop %v1832
        %v1834 = vsel %vm509, %v1833, 0.0
        %1835 = vadd.xlane.f32.xlu0 %v1834
        %v1836 = vpop.xlane.xlu0 %1835
        %v1837 = vrcp.pop %v1836
        %v1838 = vmul.f32 %v1836, %v1837
        %v1839 = vsub.f32 1.0, %v1838
        %v1840 = vmul.f32 %v1837, %v1839
        %v1841 = vadd.f32 %v1837, %v1840
        %vm1842 = vweird.f32 %v1836
        %vm1843 = vweird.f32 %v1837
        %vm1844 = vmor %vm1842, %vm1843
        %v1845 = vsel %vm1844, %v1837, %v1841
        %v1846 = vand.u32 2147483647, %v1836
        %vm1847 = vcmp.eq.f32.partialorder %v1846, 8.507059e+37
        %v1848 = vand.u32 %v1836, 2147483648
        %v1849 = vor.u32 1.1754944e-38, %v1848
        %v1850 = vsel %vm1847, %v1849, %v1845
        %v1851 = vmul.f32 %v1833, %v1850
        %1852 = vst.msk [vmem:[%s488] sm:$0xff] %vm509, %v1851
        %s1853 = sand.u32 %s341, 1
        %s1854 = scalar_lea.sflag [#allocation4], %s1853
        %s1855 = sand.u32 %s341, 1
        %s1856 = smul.addr %s1855, 8
        %s1857 = scalar_lea.vmem [#allocation5], %s1856
        // Predicated region
        $region81: #{tpu_custom_call.1} parent=75 // pred_check
          %p1858 = pneg %p351
        $region82: #{tpu_custom_call.1} parent=75 // pred_check_branch
          %1860 = sbr.rel (%p1858) target = $region84
        $region83: #{tpu_custom_call.1} parent=75 // pred_region
          %1862 = vsyncadd %s1854, 0
          %s1863 = smul.addr %s29, 8
          %s1864 = scalar_lea.hbm %s14, %s1863
          %s1866 = sshll.u32 %s1857, 4
          %s1867 = int_to_ptr.vmem [resolvable:$true] %s1866
          %s1868 = sshll.u32 %s1864, 4
          %s1869 = int_to_ptr.hbm [resolvable:$true] %s1868
          %1871 = dma.vmem_to_hbm [thread:$0]  %s1867, 128, %s1869, %s1854
        $region84: #{tpu_custom_call.1} parent=75 // pred_fallthru
          _
      $region76: #{tpu_custom_call.1} parent=5 // pred_fallthru
        _
      %p1872 = scmp.le.s32.totalorder 2, %s24
      // Predicated region
      $region85: #{tpu_custom_call.1} parent=5 // pred_check
        %p1873 = pneg %p1872
      $region86: #{tpu_custom_call.1} parent=5 // pred_check_branch
        %1875 = sbr.rel (%p1873) target = $region88
      $region87: #{tpu_custom_call.1} parent=5 // pred_region
        %s1876 = ssub.s32 %s24, 2
        // Predicated region
        $region89: #{tpu_custom_call.1} parent=87 // pred_check
          %p1877 = pneg %p357
        $region90: #{tpu_custom_call.1} parent=87 // pred_check_branch
          %1879 = sbr.rel (%p1877) target = $region92
        $region91: #{tpu_custom_call.1} parent=87 // pred_region
          %s1880 = sand.u32 %s342, 1
          %s1881 = scalar_lea.sflag [#allocation4], %s1880
          %s1882 = sand.u32 %s342, 1
          %s1883 = smul.addr %s1882, 8
          %s1884 = scalar_lea.vmem [#allocation5], %s1883
          %1886 = dma.done %s1881, 128
        $region92: #{tpu_custom_call.1} parent=87 // pred_fallthru
          _
      $region88: #{tpu_custom_call.1} parent=5 // pred_fallthru
        _
    $region6: #{tpu_custom_call.1} parent=1 // loop_footer
      %s28 = sadd.s32 1, %s24
    $region7: #{tpu_custom_call.1} parent=1 // loop_footer_branch
      %23 = sbr.rel target = $region3
    $region8: #{tpu_custom_call.1} parent=1 // loop_exit
      _
    %1887 = vsyncpa [#allocation3], 1
    %s1888 = scalar_lea.sflag [#allocation3], 1
    %1889 = vsyncpa %s1888, 1
    %1890 = vsyncpa [#allocation4], 1
    %s1891 = scalar_lea.sflag [#allocation4], 1
    %1892 = vsyncpa %s1891, 1

</llo_original>
